<compile_context>
chip_gen: v7x
topology: tpu7x:2x2x1
jax: 0.10.0
libtpu: 0.0.40
codegen_flags: <defaults>
</compile_context>

<pallas_src>
import functools

import jax
import jax.numpy as jnp
from jax.experimental import pallas as pl
from jax.experimental.pallas import tpu as pltpu

_MM_DTYPE = jnp.bfloat16   # matmul operand dtype (f32 accumulation)


def _round_up(n, m):
    return ((n + m - 1) // m) * m


# ----------------------------------------------------------------------------
# In-kernel helpers
# ----------------------------------------------------------------------------

def _bn_relu(x, gamma, beta, eps=1e-5):
    """BatchNorm1d (training-mode, biased batch stats over axis 0) + ReLU.

    One-pass statistics: var = E[x^2] - mean^2 (clamped at 0)."""
    inv_n = 1.0 / x.shape[0]
    s1 = jnp.sum(x, axis=0, keepdims=True)
    s2 = jnp.sum(x * x, axis=0, keepdims=True)
    mean = s1 * inv_n
    var = jnp.maximum(s2 * inv_n - mean * mean, 0.0)
    y = (x - mean) * jax.lax.rsqrt(var + eps) * gamma + beta
    return jnp.maximum(y, 0.0)


def _mlp_head(h_bf, w1, b1, g1, be1, w2, b2, g2, be2, w3, b3):
    """Linear -> BN -> ReLU -> Linear -> BN -> ReLU -> Linear (pre-activation)."""
    x = jnp.dot(h_bf, w1[...], preferred_element_type=jnp.float32) + b1[...]
    x = _bn_relu(x, g1[...], be1[...])
    x = jnp.dot(x.astype(_MM_DTYPE), w2[...],
                preferred_element_type=jnp.float32) + b2[...]
    x = _bn_relu(x, g2[...], be2[...])
    return jnp.dot(x.astype(_MM_DTYPE), w3[...],
                   preferred_element_type=jnp.float32) + b3[...]


# ----------------------------------------------------------------------------
# Fused forward kernel (one grid step == one view)
# ----------------------------------------------------------------------------

def _network_kernel(tok_ref, wp_ref, bp_ref, pool_ref,
                    iw1, ib1, ig1, ibe1, iw2, ib2, ig2, ibe2, iw3, ib3,
                    cw1, cb1, cg1, cbe1, cw2, cb2, cg2, cbe2, cw3, cb3,
                    z_ref, c_ref, *, class_num):
    # ---- stand-in ViT backbone: patch-embed matmul + GELU + mean pool ------
    t = tok_ref[...].astype(_MM_DTYPE)                       # (B*N, DP_PAD)
    e = jnp.dot(t, wp_ref[...],
                preferred_element_type=jnp.float32) + bp_ref[...]
    e = jax.nn.gelu(e)                                       # (B*N, D_PAD)
    h = jnp.dot(pool_ref[...], e,
                preferred_element_type=jnp.float32)          # (B, D_PAD)
    h_bf = h.astype(_MM_DTYPE)

    # ---- instance projector -> L2 normalize (padded lanes are exactly 0) ---
    y = _mlp_head(h_bf, iw1, ib1, ig1, ibe1, iw2, ib2, ig2, ibe2, iw3, ib3)
    ss = jnp.sum(y * y, axis=1, keepdims=True)
    z_ref[...] = y * jax.lax.rsqrt(jnp.maximum(ss, 1e-24))   # == y / max(||y||, 1e-12)

    # ---- cluster projector -> softmax over the real class lanes ------------
    y = _mlp_head(h_bf, cw1, cb1, cg1, cbe1, cw2, cb2, cg2, cbe2, cw3, cb3)
    lane = jax.lax.broadcasted_iota(jnp.int32, y.shape, 1)
    y = jnp.where(lane < class_num, y, -1e30)
    m = jnp.max(y, axis=1, keepdims=True)
    p = jnp.exp(y - m)
    c_ref[...] = p * pl.reciprocal(jnp.sum(p, axis=1, keepdims=True),
                                   approx=False)


# ----------------------------------------------------------------------------
# Wrapper (layout plumbing: patchify, padding, BlockSpecs)
# ----------------------------------------------------------------------------

def _pad_head_params(p, d_pad, out_pad):
    """Pad a projector's parameters to lane-dense shapes; bf16 matmul operands.

    Zero-padded rows of w1 multiply zero-padded columns of h, and zero-padded
    columns of w3/b3 produce exactly-zero output lanes, so numerics match the
    unpadded projector."""
    in_dim, mid = p["w1"].shape
    out_dim = p["w3"].shape[1]
    w1 = jnp.pad(p["w1"], ((0, d_pad - in_dim), (0, 0))).astype(_MM_DTYPE)
    w2 = p["w2"].astype(_MM_DTYPE)
    w3 = jnp.pad(p["w3"], ((0, 0), (0, out_pad - out_dim))).astype(_MM_DTYPE)
    b1 = p["b1"].reshape(1, mid)
    g1 = p["g1"].reshape(1, mid)
    be1 = p["be1"].reshape(1, mid)
    b2 = p["b2"].reshape(1, mid)
    g2 = p["g2"].reshape(1, mid)
    be2 = p["be2"].reshape(1, mid)
    b3 = jnp.pad(p["b3"], (0, out_pad - out_dim)).reshape(1, out_pad)
    return (w1, b1, g1, be1, w2, b2, g2, be2, w3, b3)


def network_vtcc_forward(x_i, x_j, params, patch=4):
    """Reproduces Network_VTCC.forward(x_i, x_j) -> (z_i, z_j, c_i, c_j)."""
    B, C, H, W = x_i.shape
    N = (H // patch) * (W // patch)
    bn = B * N
    dp = patch * patch * C

    dim = params["vtcc"]["patch_w"].shape[1]
    feature_dim = params["instance"]["w3"].shape[1]
    class_num = params["cluster"]["w3"].shape[1]

    dp_pad = _round_up(dp, 128)
    d_pad = _round_up(dim, 128)
    feat_pad = _round_up(feature_dim, 128)
    clus_pad = _round_up(class_num, 128)

    # ---- patchify both views at once: NCHW -> (2, B*N, dp_pad) tokens ------
    xs = jnp.stack([x_i, x_j], axis=0)                       # (2,B,C,H,W)
    xs = jnp.transpose(xs, (0, 1, 3, 4, 2))                  # (2,B,H,W,C)
    xs = xs.reshape(2, B, H // patch, patch, W // patch, patch, C)
    xs = jnp.transpose(xs, (0, 1, 2, 4, 3, 5, 6))
    tokens = xs.reshape(2, bn, dp)
    tokens = jnp.pad(tokens, ((0, 0), (0, 0), (0, dp_pad - dp)))

    # backbone params, zero-padded to lane-dense shapes
    wp = jnp.pad(params["vtcc"]["patch_w"],
                 ((0, dp_pad - dp), (0, d_pad - dim))).astype(_MM_DTYPE)
    bp = jnp.pad(params["vtcc"]["patch_b"], (0, d_pad - dim)).reshape(1, d_pad)

    # mean-pool over tokens expressed as a tiny (B, B*N) matmul
    pool = (jnp.arange(bn)[None, :] // N ==
            jnp.arange(B)[:, None]).astype(jnp.float32) / N

    inst_args = _pad_head_params(params["instance"], d_pad, feat_pad)
    clus_args = _pad_head_params(params["cluster"], d_pad, clus_pad)

    def _resident(a):
        nd = a.ndim
        return pl.BlockSpec(a.shape, lambda *_: (0,) * nd)   # constant block -> no re-DMA

    in_specs = (
        [pl.BlockSpec((None, bn, dp_pad), lambda v: (v, 0, 0))]   # tokens per view
        + [_resident(wp), _resident(bp), _resident(pool)]
        + [_resident(a) for a in inst_args]
        + [_resident(a) for a in clus_args]
    )
    out_specs = [
        pl.BlockSpec((None, B, feat_pad), lambda v: (v, 0, 0)),
        pl.BlockSpec((None, B, clus_pad), lambda v: (v, 0, 0)),
    ]
    out_shape = [
        jax.ShapeDtypeStruct((2, B, feat_pad), jnp.float32),
        jax.ShapeDtypeStruct((2, B, clus_pad), jnp.float32),
    ]

    kernel = functools.partial(_network_kernel, class_num=class_num)
    z_pad, c_pad = pl.pallas_call(
        kernel,
        grid=(2,),
        in_specs=in_specs,
        out_specs=out_specs,
        out_shape=out_shape,
        compiler_params=pltpu.CompilerParams(
            dimension_semantics=("parallel",),   # shard the two views across v7x TCs
        ),
    )(tokens, wp, bp, pool, *inst_args, *clus_args)

    z_i = z_pad[0, :, :feature_dim]
    z_j = z_pad[1, :, :feature_dim]
    c_i = c_pad[0, :, :class_num]
    c_j = c_pad[1, :, :class_num]
    return z_i, z_j, c_i, c_j


# ----------------------------------------------------------------------------
# Deterministic parameter construction (f32 "PyTorch-style" params)
# ----------------------------------------------------------------------------

def _init_projector(key, in_dim, mid_dim, out_dim):
    ks = jax.random.split(key, 3)

    def lin(k, di, do):
        s = 1.0 / jnp.sqrt(di)
        kw, kb = jax.random.split(k)
        return (jax.random.uniform(kw, (di, do), jnp.float32, -s, s),
                jax.random.uniform(kb, (do,), jnp.float32, -s, s))

    w1, b1 = lin(ks[0], in_dim, mid_dim)
    w2, b2 = lin(ks[1], mid_dim, mid_dim)
    w3, b3 = lin(ks[2], mid_dim, out_dim)
    return dict(
        w1=w1, b1=b1, g1=jnp.ones((mid_dim,), jnp.float32),
        be1=jnp.zeros((mid_dim,), jnp.float32),
        w2=w2, b2=b2, g2=jnp.ones((mid_dim,), jnp.float32),
        be2=jnp.zeros((mid_dim,), jnp.float32),
        w3=w3, b3=b3,
    )


def make_params(key, *, dim, feature_dim, class_num, patch, channels):
    mid_dim = dim * 4
    k_vtcc, k_inst, k_clus = jax.random.split(key, 3)
    dp = patch * patch * channels
    kw, kb = jax.random.split(k_vtcc)
    s = 1.0 / jnp.sqrt(dp)
    vtcc = dict(
        patch_w=jax.random.uniform(kw, (dp, dim), jnp.float32, -s, s),
        patch_b=jax.random.uniform(kb, (dim,), jnp.float32, -s, s),
    )
    return dict(
        vtcc=vtcc,
        instance=_init_projector(k_inst, dim, mid_dim, feature_dim),
        cluster=_init_projector(k_clus, dim, mid_dim, class_num),
    )


# ----------------------------------------------------------------------------
# Demo
# ----------------------------------------------------------------------------

if __name__ == "__main__":
    B, C, H, W = 8, 3, 16, 16          # small PyTorch-style NCHW inputs
    DIM = 32                           # vtcc.dim
    FEATURE_DIM = 16
    CLASS_NUM = 10
    PATCH = 4

    root = jax.random.PRNGKey(0)
    k_params, k_xi, k_xj = jax.random.split(root, 3)

    params = make_params(k_params, dim=DIM, feature_dim=FEATURE_DIM,
                         class_num=CLASS_NUM, patch=PATCH, channels=C)

    x_i = jax.random.normal(k_xi, (B, C, H, W), jnp.float32)
    x_j = jax.random.normal(k_xj, (B, C, H, W), jnp.float32)

    fwd = jax.jit(functools.partial(network_vtcc_forward, patch=PATCH))
    z_i, z_j, c_i, c_j = fwd(x_i, x_j, params)
    jax.block_until_ready((z_i, z_j, c_i, c_j))

    assert z_i.shape == (B, FEATURE_DIM) and z_j.shape == (B, FEATURE_DIM)
    assert c_i.shape == (B, CLASS_NUM) and c_j.shape == (B, CLASS_NUM)
    # sanity: z rows are unit-norm, c rows sum to 1
    assert jnp.allclose(jnp.linalg.norm(z_i, axis=1), 1.0, atol=1e-4)
    assert jnp.allclose(jnp.linalg.norm(z_j, axis=1), 1.0, atol=1e-4)
    assert jnp.allclose(jnp.sum(c_i, axis=1), 1.0, atol=1e-4)
    assert jnp.allclose(jnp.sum(c_j, axis=1), 1.0, atol=1e-4)

    print("KERNEL_OK")
</pallas_src>

<mosaic_0001>
module attributes {stable_mosaic.version = 11 : i64} {
  func.func @_network_kernel(%arg0: i32, %arg1: memref<1x128x128xf32, #tpu.memory_space<vmem>>, %arg2: memref<128x128xbf16, #tpu.memory_space<vmem>>, %arg3: memref<1x128xf32, #tpu.memory_space<vmem>>, %arg4: memref<8x128xf32, #tpu.memory_space<vmem>>, %arg5: memref<128x128xbf16, #tpu.memory_space<vmem>>, %arg6: memref<1x128xf32, #tpu.memory_space<vmem>>, %arg7: memref<1x128xf32, #tpu.memory_space<vmem>>, %arg8: memref<1x128xf32, #tpu.memory_space<vmem>>, %arg9: memref<128x128xbf16, #tpu.memory_space<vmem>>, %arg10: memref<1x128xf32, #tpu.memory_space<vmem>>, %arg11: memref<1x128xf32, #tpu.memory_space<vmem>>, %arg12: memref<1x128xf32, #tpu.memory_space<vmem>>, %arg13: memref<128x128xbf16, #tpu.memory_space<vmem>>, %arg14: memref<1x128xf32, #tpu.memory_space<vmem>>, %arg15: memref<128x128xbf16, #tpu.memory_space<vmem>>, %arg16: memref<1x128xf32, #tpu.memory_space<vmem>>, %arg17: memref<1x128xf32, #tpu.memory_space<vmem>>, %arg18: memref<1x128xf32, #tpu.memory_space<vmem>>, %arg19: memref<128x128xbf16, #tpu.memory_space<vmem>>, %arg20: memref<1x128xf32, #tpu.memory_space<vmem>>, %arg21: memref<1x128xf32, #tpu.memory_space<vmem>>, %arg22: memref<1x128xf32, #tpu.memory_space<vmem>>, %arg23: memref<128x128xbf16, #tpu.memory_space<vmem>>, %arg24: memref<1x128xf32, #tpu.memory_space<vmem>>, %arg25: memref<1x8x128xf32, #tpu.memory_space<vmem>>, %arg26: memref<1x8x128xf32, #tpu.memory_space<vmem>>) attributes {dimension_semantics = [#tpu.dimension_semantics<parallel>], iteration_bounds = array<i64: 2>, scalar_prefetch = 0 : i64, scratch_operands = 0 : i64, tpu.core_type = #tpu.core_type<tc>, window_params = [{transform_indices = @transform_0, window_bounds = array<i64: 1, 128, 128>}, {pipeline_mode = #tpu.pipeline_mode<synchronous>, transform_indices = @transform_1, window_bounds = array<i64: 128, 128>}, {pipeline_mode = #tpu.pipeline_mode<synchronous>, transform_indices = @transform_2, window_bounds = array<i64: 1, 128>}, {pipeline_mode = #tpu.pipeline_mode<synchronous>, transform_indices = @transform_3, window_bounds = array<i64: 8, 128>}, {pipeline_mode = #tpu.pipeline_mode<synchronous>, transform_indices = @transform_4, window_bounds = array<i64: 128, 128>}, {pipeline_mode = #tpu.pipeline_mode<synchronous>, transform_indices = @transform_5, window_bounds = array<i64: 1, 128>}, {pipeline_mode = #tpu.pipeline_mode<synchronous>, transform_indices = @transform_6, window_bounds = array<i64: 1, 128>}, {pipeline_mode = #tpu.pipeline_mode<synchronous>, transform_indices = @transform_7, window_bounds = array<i64: 1, 128>}, {pipeline_mode = #tpu.pipeline_mode<synchronous>, transform_indices = @transform_8, window_bounds = array<i64: 128, 128>}, {pipeline_mode = #tpu.pipeline_mode<synchronous>, transform_indices = @transform_9, window_bounds = array<i64: 1, 128>}, {pipeline_mode = #tpu.pipeline_mode<synchronous>, transform_indices = @transform_10, window_bounds = array<i64: 1, 128>}, {pipeline_mode = #tpu.pipeline_mode<synchronous>, transform_indices = @transform_11, window_bounds = array<i64: 1, 128>}, {pipeline_mode = #tpu.pipeline_mode<synchronous>, transform_indices = @transform_12, window_bounds = array<i64: 128, 128>}, {pipeline_mode = #tpu.pipeline_mode<synchronous>, transform_indices = @transform_13, window_bounds = array<i64: 1, 128>}, {pipeline_mode = #tpu.pipeline_mode<synchronous>, transform_indices = @transform_14, window_bounds = array<i64: 128, 128>}, {pipeline_mode = #tpu.pipeline_mode<synchronous>, transform_indices = @transform_15, window_bounds = array<i64: 1, 128>}, {pipeline_mode = #tpu.pipeline_mode<synchronous>, transform_indices = @transform_16, window_bounds = array<i64: 1, 128>}, {pipeline_mode = #tpu.pipeline_mode<synchronous>, transform_indices = @transform_17, window_bounds = array<i64: 1, 128>}, {pipeline_mode = #tpu.pipeline_mode<synchronous>, transform_indices = @transform_18, window_bounds = array<i64: 128, 128>}, {pipeline_mode = #tpu.pipeline_mode<synchronous>, transform_indices = @transform_19, window_bounds = array<i64: 1, 128>}, {pipeline_mode = #tpu.pipeline_mode<synchronous>, transform_indices = @transform_20, window_bounds = array<i64: 1, 128>}, {pipeline_mode = #tpu.pipeline_mode<synchronous>, transform_indices = @transform_21, window_bounds = array<i64: 1, 128>}, {pipeline_mode = #tpu.pipeline_mode<synchronous>, transform_indices = @transform_22, window_bounds = array<i64: 128, 128>}, {pipeline_mode = #tpu.pipeline_mode<synchronous>, transform_indices = @transform_23, window_bounds = array<i64: 1, 128>}, {transform_indices = @transform_24, window_bounds = array<i64: 1, 8, 128>}, {transform_indices = @transform_25, window_bounds = array<i64: 1, 8, 128>}]} {
    %c0 = arith.constant 0 : index
    %c0_0 = arith.constant 0 : index
    %c0_1 = arith.constant 0 : index
    %0 = vector.load %arg1[%c0, %c0_0, %c0_1] : memref<1x128x128xf32, #tpu.memory_space<vmem>>, vector<1x128x128xf32>
    %1 = vector.shape_cast %0 : vector<1x128x128xf32> to vector<128x128xf32>
    %2 = arith.truncf %1 : vector<128x128xf32> to vector<128x128xbf16>
    %c0_2 = arith.constant 0 : index
    %c0_3 = arith.constant 0 : index
    %3 = vector.load %arg2[%c0_2, %c0_3] : memref<128x128xbf16, #tpu.memory_space<vmem>>, vector<128x128xbf16>
    %cst = arith.constant dense<0.000000e+00> : vector<128x128xf32>
    %4 = tpu.matmul %2, %3, %cst {dimension_numbers = #tpu.dot_dimension_numbers<[1], [0], [0], [1], [0, 0, 1, 1], [], []>} : vector<128x128xbf16>, vector<128x128xbf16>, vector<128x128xf32> -> vector<128x128xf32>
    %c0_4 = arith.constant 0 : index
    %c0_5 = arith.constant 0 : index
    %5 = vector.load %arg3[%c0_4, %c0_5] : memref<1x128xf32, #tpu.memory_space<vmem>>, vector<1x128xf32>
    %6 = vector.broadcast %5 : vector<1x128xf32> to vector<128x128xf32>
    %7 = arith.addf %4, %6 : vector<128x128xf32>
    %8 = arith.mulf %7, %7 : vector<128x128xf32>
    %9 = arith.mulf %7, %8 : vector<128x128xf32>
    %cst_6 = arith.constant 4.471500e-02 : f32
    %10 = vector.broadcast %cst_6 : f32 to vector<128x128xf32>
    %11 = arith.mulf %10, %9 : vector<128x128xf32>
    %12 = arith.addf %7, %11 : vector<128x128xf32>
    %cst_7 = arith.constant 0.797884583 : f32
    %13 = vector.broadcast %cst_7 : f32 to vector<128x128xf32>
    %14 = arith.mulf %13, %12 : vector<128x128xf32>
    %15 = math.tanh %14 : vector<128x128xf32>
    %cst_8 = arith.constant 1.000000e+00 : f32
    %16 = vector.broadcast %cst_8 : f32 to vector<128x128xf32>
    %17 = arith.addf %16, %15 : vector<128x128xf32>
    %cst_9 = arith.constant 5.000000e-01 : f32
    %18 = vector.broadcast %cst_9 : f32 to vector<128x128xf32>
    %19 = arith.mulf %18, %17 : vector<128x128xf32>
    %20 = arith.mulf %7, %19 : vector<128x128xf32>
    %c0_10 = arith.constant 0 : index
    %c0_11 = arith.constant 0 : index
    %21 = vector.load %arg4[%c0_10, %c0_11] : memref<8x128xf32, #tpu.memory_space<vmem>>, vector<8x128xf32>
    %cst_12 = arith.constant dense<0.000000e+00> : vector<8x128xf32>
    %22 = tpu.matmul %21, %20, %cst_12 {dimension_numbers = #tpu.dot_dimension_numbers<[1], [0], [0], [1], [0, 0, 1, 1], [], []>} : vector<8x128xf32>, vector<128x128xf32>, vector<8x128xf32> -> vector<8x128xf32>
    %23 = arith.truncf %22 : vector<8x128xf32> to vector<8x128xbf16>
    %c0_13 = arith.constant 0 : index
    %c0_14 = arith.constant 0 : index
    %24 = vector.load %arg5[%c0_13, %c0_14] : memref<128x128xbf16, #tpu.memory_space<vmem>>, vector<128x128xbf16>
    %cst_15 = arith.constant dense<0.000000e+00> : vector<8x128xf32>
    %25 = tpu.matmul %23, %24, %cst_15 {dimension_numbers = #tpu.dot_dimension_numbers<[1], [0], [0], [1], [0, 0, 1, 1], [], []>} : vector<8x128xbf16>, vector<128x128xbf16>, vector<8x128xf32> -> vector<8x128xf32>
    %c0_16 = arith.constant 0 : index
    %c0_17 = arith.constant 0 : index
    %26 = vector.load %arg6[%c0_16, %c0_17] : memref<1x128xf32, #tpu.memory_space<vmem>>, vector<1x128xf32>
    %27 = vector.broadcast %26 : vector<1x128xf32> to vector<8x128xf32>
    %28 = arith.addf %25, %27 : vector<8x128xf32>
    %c0_18 = arith.constant 0 : index
    %c0_19 = arith.constant 0 : index
    %29 = vector.load %arg7[%c0_18, %c0_19] : memref<1x128xf32, #tpu.memory_space<vmem>>, vector<1x128xf32>
    %c0_20 = arith.constant 0 : index
    %c0_21 = arith.constant 0 : index
    %30 = vector.load %arg8[%c0_20, %c0_21] : memref<1x128xf32, #tpu.memory_space<vmem>>, vector<1x128xf32>
    %cst_22 = arith.constant dense<0.000000e+00> : vector<128xf32>
    %31 = vector.multi_reduction <add>, %28, %cst_22 [0] : vector<8x128xf32> to vector<128xf32>
    %32 = vector.shape_cast %31 : vector<128xf32> to vector<1x128xf32>
    %33 = arith.mulf %28, %28 : vector<8x128xf32>
    %cst_23 = arith.constant dense<0.000000e+00> : vector<128xf32>
    %34 = vector.multi_reduction <add>, %33, %cst_23 [0] : vector<8x128xf32> to vector<128xf32>
    %35 = vector.shape_cast %34 : vector<128xf32> to vector<1x128xf32>
    %cst_24 = arith.constant 1.250000e-01 : f32
    %36 = vector.broadcast %cst_24 : f32 to vector<1x128xf32>
    %37 = arith.mulf %32, %36 : vector<1x128xf32>
    %cst_25 = arith.constant 1.250000e-01 : f32
    %38 = vector.broadcast %cst_25 : f32 to vector<1x128xf32>
    %39 = arith.mulf %35, %38 : vector<1x128xf32>
    %40 = arith.mulf %37, %37 : vector<1x128xf32>
    %41 = arith.subf %39, %40 : vector<1x128xf32>
    %cst_26 = arith.constant 0.000000e+00 : f32
    %42 = vector.broadcast %cst_26 : f32 to vector<1x128xf32>
    %43 = arith.maximumf %41, %42 : vector<1x128xf32>
    %44 = vector.broadcast %37 : vector<1x128xf32> to vector<8x128xf32>
    %45 = arith.subf %28, %44 : vector<8x128xf32>
    %cst_27 = arith.constant 9.99999974E-6 : f32
    %46 = vector.broadcast %cst_27 : f32 to vector<1x128xf32>
    %47 = arith.addf %43, %46 : vector<1x128xf32>
    %48 = math.rsqrt %47 : vector<1x128xf32>
    %49 = vector.broadcast %48 : vector<1x128xf32> to vector<8x128xf32>
    %50 = arith.mulf %45, %49 : vector<8x128xf32>
    %51 = vector.broadcast %29 : vector<1x128xf32> to vector<8x128xf32>
    %52 = arith.mulf %50, %51 : vector<8x128xf32>
    %53 = vector.broadcast %30 : vector<1x128xf32> to vector<8x128xf32>
    %54 = arith.addf %52, %53 : vector<8x128xf32>
    %cst_28 = arith.constant 0.000000e+00 : f32
    %55 = vector.broadcast %cst_28 : f32 to vector<8x128xf32>
    %56 = arith.maximumf %54, %55 : vector<8x128xf32>
    %57 = arith.truncf %56 : vector<8x128xf32> to vector<8x128xbf16>
    %c0_29 = arith.constant 0 : index
    %c0_30 = arith.constant 0 : index
    %58 = vector.load %arg9[%c0_29, %c0_30] : memref<128x128xbf16, #tpu.memory_space<vmem>>, vector<128x128xbf16>
    %cst_31 = arith.constant dense<0.000000e+00> : vector<8x128xf32>
    %59 = tpu.matmul %57, %58, %cst_31 {dimension_numbers = #tpu.dot_dimension_numbers<[1], [0], [0], [1], [0, 0, 1, 1], [], []>} : vector<8x128xbf16>, vector<128x128xbf16>, vector<8x128xf32> -> vector<8x128xf32>
    %c0_32 = arith.constant 0 : index
    %c0_33 = arith.constant 0 : index
    %60 = vector.load %arg10[%c0_32, %c0_33] : memref<1x128xf32, #tpu.memory_space<vmem>>, vector<1x128xf32>
    %61 = vector.broadcast %60 : vector<1x128xf32> to vector<8x128xf32>
    %62 = arith.addf %59, %61 : vector<8x128xf32>
    %c0_34 = arith.constant 0 : index
    %c0_35 = arith.constant 0 : index
    %63 = vector.load %arg11[%c0_34, %c0_35] : memref<1x128xf32, #tpu.memory_space<vmem>>, vector<1x128xf32>
    %c0_36 = arith.constant 0 : index
    %c0_37 = arith.constant 0 : index
    %64 = vector.load %arg12[%c0_36, %c0_37] : memref<1x128xf32, #tpu.memory_space<vmem>>, vector<1x128xf32>
    %cst_38 = arith.constant dense<0.000000e+00> : vector<128xf32>
    %65 = vector.multi_reduction <add>, %62, %cst_38 [0] : vector<8x128xf32> to vector<128xf32>
    %66 = vector.shape_cast %65 : vector<128xf32> to vector<1x128xf32>
    %67 = arith.mulf %62, %62 : vector<8x128xf32>
    %cst_39 = arith.constant dense<0.000000e+00> : vector<128xf32>
    %68 = vector.multi_reduction <add>, %67, %cst_39 [0] : vector<8x128xf32> to vector<128xf32>
    %69 = vector.shape_cast %68 : vector<128xf32> to vector<1x128xf32>
    %cst_40 = arith.constant 1.250000e-01 : f32
    %70 = vector.broadcast %cst_40 : f32 to vector<1x128xf32>
    %71 = arith.mulf %66, %70 : vector<1x128xf32>
    %cst_41 = arith.constant 1.250000e-01 : f32
    %72 = vector.broadcast %cst_41 : f32 to vector<1x128xf32>
    %73 = arith.mulf %69, %72 : vector<1x128xf32>
    %74 = arith.mulf %71, %71 : vector<1x128xf32>
    %75 = arith.subf %73, %74 : vector<1x128xf32>
    %cst_42 = arith.constant 0.000000e+00 : f32
    %76 = vector.broadcast %cst_42 : f32 to vector<1x128xf32>
    %77 = arith.maximumf %75, %76 : vector<1x128xf32>
    %78 = vector.broadcast %71 : vector<1x128xf32> to vector<8x128xf32>
    %79 = arith.subf %62, %78 : vector<8x128xf32>
    %cst_43 = arith.constant 9.99999974E-6 : f32
    %80 = vector.broadcast %cst_43 : f32 to vector<1x128xf32>
    %81 = arith.addf %77, %80 : vector<1x128xf32>
    %82 = math.rsqrt %81 : vector<1x128xf32>
    %83 = vector.broadcast %82 : vector<1x128xf32> to vector<8x128xf32>
    %84 = arith.mulf %79, %83 : vector<8x128xf32>
    %85 = vector.broadcast %63 : vector<1x128xf32> to vector<8x128xf32>
    %86 = arith.mulf %84, %85 : vector<8x128xf32>
    %87 = vector.broadcast %64 : vector<1x128xf32> to vector<8x128xf32>
    %88 = arith.addf %86, %87 : vector<8x128xf32>
    %cst_44 = arith.constant 0.000000e+00 : f32
    %89 = vector.broadcast %cst_44 : f32 to vector<8x128xf32>
    %90 = arith.maximumf %88, %89 : vector<8x128xf32>
    %91 = arith.truncf %90 : vector<8x128xf32> to vector<8x128xbf16>
    %c0_45 = arith.constant 0 : index
    %c0_46 = arith.constant 0 : index
    %92 = vector.load %arg13[%c0_45, %c0_46] : memref<128x128xbf16, #tpu.memory_space<vmem>>, vector<128x128xbf16>
    %cst_47 = arith.constant dense<0.000000e+00> : vector<8x128xf32>
    %93 = tpu.matmul %91, %92, %cst_47 {dimension_numbers = #tpu.dot_dimension_numbers<[1], [0], [0], [1], [0, 0, 1, 1], [], []>} : vector<8x128xbf16>, vector<128x128xbf16>, vector<8x128xf32> -> vector<8x128xf32>
    %c0_48 = arith.constant 0 : index
    %c0_49 = arith.constant 0 : index
    %94 = vector.load %arg14[%c0_48, %c0_49] : memref<1x128xf32, #tpu.memory_space<vmem>>, vector<1x128xf32>
    %95 = vector.broadcast %94 : vector<1x128xf32> to vector<8x128xf32>
    %96 = arith.addf %93, %95 : vector<8x128xf32>
    %97 = arith.mulf %96, %96 : vector<8x128xf32>
    %cst_50 = arith.constant dense<0.000000e+00> : vector<8xf32>
    %98 = vector.multi_reduction <add>, %97, %cst_50 [1] : vector<8x128xf32> to vector<8xf32>
    %99 = vector.shape_cast %98 : vector<8xf32> to vector<8x1xf32>
    %cst_51 = arith.constant 1.000000e-24 : f32
    %100 = vector.broadcast %cst_51 : f32 to vector<8x1xf32>
    %101 = arith.maximumf %99, %100 : vector<8x1xf32>
    %102 = math.rsqrt %101 : vector<8x1xf32>
    %103 = vector.broadcast %102 : vector<8x1xf32> to vector<8x128xf32>
    %104 = arith.mulf %96, %103 : vector<8x128xf32>
    %c0_52 = arith.constant 0 : index
    %c0_53 = arith.constant 0 : index
    %c0_54 = arith.constant 0 : index
    %105 = vector.load %arg25[%c0_52, %c0_53, %c0_54] : memref<1x8x128xf32, #tpu.memory_space<vmem>>, vector<1x8x128xf32>
    %106 = vector.shape_cast %105 : vector<1x8x128xf32> to vector<8x128xf32>
    %107 = vector.shape_cast %104 : vector<8x128xf32> to vector<1x8x128xf32>
    tpu.vector_store %arg25[%c0_52, %c0_53, %c0_54], %107 {strides = array<i32>} : memref<1x8x128xf32, #tpu.memory_space<vmem>>, vector<1x8x128xf32>,
    %c0_55 = arith.constant 0 : index
    %c0_56 = arith.constant 0 : index
    %108 = vector.load %arg15[%c0_55, %c0_56] : memref<128x128xbf16, #tpu.memory_space<vmem>>, vector<128x128xbf16>
    %cst_57 = arith.constant dense<0.000000e+00> : vector<8x128xf32>
    %109 = tpu.matmul %23, %108, %cst_57 {dimension_numbers = #tpu.dot_dimension_numbers<[1], [0], [0], [1], [0, 0, 1, 1], [], []>} : vector<8x128xbf16>, vector<128x128xbf16>, vector<8x128xf32> -> vector<8x128xf32>
    %c0_58 = arith.constant 0 : index
    %c0_59 = arith.constant 0 : index
    %110 = vector.load %arg16[%c0_58, %c0_59] : memref<1x128xf32, #tpu.memory_space<vmem>>, vector<1x128xf32>
    %111 = vector.broadcast %110 : vector<1x128xf32> to vector<8x128xf32>
    %112 = arith.addf %109, %111 : vector<8x128xf32>
    %c0_60 = arith.constant 0 : index
    %c0_61 = arith.constant 0 : index
    %113 = vector.load %arg17[%c0_60, %c0_61] : memref<1x128xf32, #tpu.memory_space<vmem>>, vector<1x128xf32>
    %c0_62 = arith.constant 0 : index
    %c0_63 = arith.constant 0 : index
    %114 = vector.load %arg18[%c0_62, %c0_63] : memref<1x128xf32, #tpu.memory_space<vmem>>, vector<1x128xf32>
    %cst_64 = arith.constant dense<0.000000e+00> : vector<128xf32>
    %115 = vector.multi_reduction <add>, %112, %cst_64 [0] : vector<8x128xf32> to vector<128xf32>
    %116 = vector.shape_cast %115 : vector<128xf32> to vector<1x128xf32>
    %117 = arith.mulf %112, %112 : vector<8x128xf32>
    %cst_65 = arith.constant dense<0.000000e+00> : vector<128xf32>
    %118 = vector.multi_reduction <add>, %117, %cst_65 [0] : vector<8x128xf32> to vector<128xf32>
    %119 = vector.shape_cast %118 : vector<128xf32> to vector<1x128xf32>
    %cst_66 = arith.constant 1.250000e-01 : f32
    %120 = vector.broadcast %cst_66 : f32 to vector<1x128xf32>
    %121 = arith.mulf %116, %120 : vector<1x128xf32>
    %cst_67 = arith.constant 1.250000e-01 : f32
    %122 = vector.broadcast %cst_67 : f32 to vector<1x128xf32>
    %123 = arith.mulf %119, %122 : vector<1x128xf32>
    %124 = arith.mulf %121, %121 : vector<1x128xf32>
    %125 = arith.subf %123, %124 : vector<1x128xf32>
    %cst_68 = arith.constant 0.000000e+00 : f32
    %126 = vector.broadcast %cst_68 : f32 to vector<1x128xf32>
    %127 = arith.maximumf %125, %126 : vector<1x128xf32>
    %128 = vector.broadcast %121 : vector<1x128xf32> to vector<8x128xf32>
    %129 = arith.subf %112, %128 : vector<8x128xf32>
    %cst_69 = arith.constant 9.99999974E-6 : f32
    %130 = vector.broadcast %cst_69 : f32 to vector<1x128xf32>
    %131 = arith.addf %127, %130 : vector<1x128xf32>
    %132 = math.rsqrt %131 : vector<1x128xf32>
    %133 = vector.broadcast %132 : vector<1x128xf32> to vector<8x128xf32>
    %134 = arith.mulf %129, %133 : vector<8x128xf32>
    %135 = vector.broadcast %113 : vector<1x128xf32> to vector<8x128xf32>
    %136 = arith.mulf %134, %135 : vector<8x128xf32>
    %137 = vector.broadcast %114 : vector<1x128xf32> to vector<8x128xf32>
    %138 = arith.addf %136, %137 : vector<8x128xf32>
    %cst_70 = arith.constant 0.000000e+00 : f32
    %139 = vector.broadcast %cst_70 : f32 to vector<8x128xf32>
    %140 = arith.maximumf %138, %139 : vector<8x128xf32>
    %141 = arith.truncf %140 : vector<8x128xf32> to vector<8x128xbf16>
    %c0_71 = arith.constant 0 : index
    %c0_72 = arith.constant 0 : index
    %142 = vector.load %arg19[%c0_71, %c0_72] : memref<128x128xbf16, #tpu.memory_space<vmem>>, vector<128x128xbf16>
    %cst_73 = arith.constant dense<0.000000e+00> : vector<8x128xf32>
    %143 = tpu.matmul %141, %142, %cst_73 {dimension_numbers = #tpu.dot_dimension_numbers<[1], [0], [0], [1], [0, 0, 1, 1], [], []>} : vector<8x128xbf16>, vector<128x128xbf16>, vector<8x128xf32> -> vector<8x128xf32>
    %c0_74 = arith.constant 0 : index
    %c0_75 = arith.constant 0 : index
    %144 = vector.load %arg20[%c0_74, %c0_75] : memref<1x128xf32, #tpu.memory_space<vmem>>, vector<1x128xf32>
    %145 = vector.broadcast %144 : vector<1x128xf32> to vector<8x128xf32>
    %146 = arith.addf %143, %145 : vector<8x128xf32>
    %c0_76 = arith.constant 0 : index
    %c0_77 = arith.constant 0 : index
    %147 = vector.load %arg21[%c0_76, %c0_77] : memref<1x128xf32, #tpu.memory_space<vmem>>, vector<1x128xf32>
    %c0_78 = arith.constant 0 : index
    %c0_79 = arith.constant 0 : index
    %148 = vector.load %arg22[%c0_78, %c0_79] : memref<1x128xf32, #tpu.memory_space<vmem>>, vector<1x128xf32>
    %cst_80 = arith.constant dense<0.000000e+00> : vector<128xf32>
    %149 = vector.multi_reduction <add>, %146, %cst_80 [0] : vector<8x128xf32> to vector<128xf32>
    %150 = vector.shape_cast %149 : vector<128xf32> to vector<1x128xf32>
    %151 = arith.mulf %146, %146 : vector<8x128xf32>
    %cst_81 = arith.constant dense<0.000000e+00> : vector<128xf32>
    %152 = vector.multi_reduction <add>, %151, %cst_81 [0] : vector<8x128xf32> to vector<128xf32>
    %153 = vector.shape_cast %152 : vector<128xf32> to vector<1x128xf32>
    %cst_82 = arith.constant 1.250000e-01 : f32
    %154 = vector.broadcast %cst_82 : f32 to vector<1x128xf32>
    %155 = arith.mulf %150, %154 : vector<1x128xf32>
    %cst_83 = arith.constant 1.250000e-01 : f32
    %156 = vector.broadcast %cst_83 : f32 to vector<1x128xf32>
    %157 = arith.mulf %153, %156 : vector<1x128xf32>
    %158 = arith.mulf %155, %155 : vector<1x128xf32>
    %159 = arith.subf %157, %158 : vector<1x128xf32>
    %cst_84 = arith.constant 0.000000e+00 : f32
    %160 = vector.broadcast %cst_84 : f32 to vector<1x128xf32>
    %161 = arith.maximumf %159, %160 : vector<1x128xf32>
    %162 = vector.broadcast %155 : vector<1x128xf32> to vector<8x128xf32>
    %163 = arith.subf %146, %162 : vector<8x128xf32>
    %cst_85 = arith.constant 9.99999974E-6 : f32
    %164 = vector.broadcast %cst_85 : f32 to vector<1x128xf32>
    %165 = arith.addf %161, %164 : vector<1x128xf32>
    %166 = math.rsqrt %165 : vector<1x128xf32>
    %167 = vector.broadcast %166 : vector<1x128xf32> to vector<8x128xf32>
    %168 = arith.mulf %163, %167 : vector<8x128xf32>
    %169 = vector.broadcast %147 : vector<1x128xf32> to vector<8x128xf32>
    %170 = arith.mulf %168, %169 : vector<8x128xf32>
    %171 = vector.broadcast %148 : vector<1x128xf32> to vector<8x128xf32>
    %172 = arith.addf %170, %171 : vector<8x128xf32>
    %cst_86 = arith.constant 0.000000e+00 : f32
    %173 = vector.broadcast %cst_86 : f32 to vector<8x128xf32>
    %174 = arith.maximumf %172, %173 : vector<8x128xf32>
    %175 = arith.truncf %174 : vector<8x128xf32> to vector<8x128xbf16>
    %c0_87 = arith.constant 0 : index
    %c0_88 = arith.constant 0 : index
    %176 = vector.load %arg23[%c0_87, %c0_88] : memref<128x128xbf16, #tpu.memory_space<vmem>>, vector<128x128xbf16>
    %cst_89 = arith.constant dense<0.000000e+00> : vector<8x128xf32>
    %177 = tpu.matmul %175, %176, %cst_89 {dimension_numbers = #tpu.dot_dimension_numbers<[1], [0], [0], [1], [0, 0, 1, 1], [], []>} : vector<8x128xbf16>, vector<128x128xbf16>, vector<8x128xf32> -> vector<8x128xf32>
    %c0_90 = arith.constant 0 : index
    %c0_91 = arith.constant 0 : index
    %178 = vector.load %arg24[%c0_90, %c0_91] : memref<1x128xf32, #tpu.memory_space<vmem>>, vector<1x128xf32>
    %179 = vector.broadcast %178 : vector<1x128xf32> to vector<8x128xf32>
    %180 = arith.addf %177, %179 : vector<8x128xf32>
    %181 = tpu.iota {dimensions = array<i32: 1>} : vector<8x128xi32>
    %c10_i32 = arith.constant 10 : i32
    %182 = vector.broadcast %c10_i32 : i32 to vector<8x128xi32>
    %183 = arith.cmpi slt, %181, %182 : vector<8x128xi32>
    %cst_92 = arith.constant -1.000000e+30 : f32
    %184 = vector.broadcast %cst_92 : f32 to vector<8x128xf32>
    %185 = arith.select %183, %180, %184 : vector<8x128xi1>, vector<8x128xf32>
    %cst_93 = arith.constant dense<0xFF800000> : vector<8xf32>
    %186 = vector.multi_reduction <maximumf>, %185, %cst_93 [1] : vector<8x128xf32> to vector<8xf32>
    %187 = vector.shape_cast %186 : vector<8xf32> to vector<8x1xf32>
    %188 = vector.broadcast %187 : vector<8x1xf32> to vector<8x128xf32>
    %189 = arith.subf %185, %188 : vector<8x128xf32>
    %190 = math.exp %189 : vector<8x128xf32>
    %cst_94 = arith.constant dense<0.000000e+00> : vector<8xf32>
    %191 = vector.multi_reduction <add>, %190, %cst_94 [1] : vector<8x128xf32> to vector<8xf32>
    %192 = vector.shape_cast %191 : vector<8xf32> to vector<8x1xf32>
    %193 = tpu.reciprocal %192 : vector<8x1xf32> -> vector<8x1xf32>
    %194 = vector.broadcast %193 : vector<8x1xf32> to vector<8x128xf32>
    %195 = arith.mulf %190, %194 : vector<8x128xf32>
    %c0_95 = arith.constant 0 : index
    %c0_96 = arith.constant 0 : index
    %c0_97 = arith.constant 0 : index
    %196 = vector.load %arg26[%c0_95, %c0_96, %c0_97] : memref<1x8x128xf32, #tpu.memory_space<vmem>>, vector<1x8x128xf32>
    %197 = vector.shape_cast %196 : vector<1x8x128xf32> to vector<8x128xf32>
    %198 = vector.shape_cast %195 : vector<8x128xf32> to vector<1x8x128xf32>
    tpu.vector_store %arg26[%c0_95, %c0_96, %c0_97], %198 {strides = array<i32>} : memref<1x8x128xf32, #tpu.memory_space<vmem>>, vector<1x8x128xf32>,
    return
  }
  func.func @transform_0(%arg0: i32) -> (i32, i32, i32) {
    %c0_i32 = arith.constant 0 : i32
    %c0_i32_0 = arith.constant 0 : i32
    %c0_i32_1 = arith.constant 0 : i32
    return %arg0, %c0_i32, %c0_i32_0 : i32, i32, i32
  }
  func.func @transform_1(%arg0: i32) -> (i32, i32) {
    %c0_i32 = arith.constant 0 : i32
    %c0_i32_0 = arith.constant 0 : i32
    %c0_i32_1 = arith.constant 0 : i32
    return %c0_i32, %c0_i32_0 : i32, i32
  }
  func.func @transform_2(%arg0: i32) -> (i32, i32) {
    %c0_i32 = arith.constant 0 : i32
    %c0_i32_0 = arith.constant 0 : i32
    %c0_i32_1 = arith.constant 0 : i32
    return %c0_i32, %c0_i32_0 : i32, i32
  }
  func.func @transform_3(%arg0: i32) -> (i32, i32) {
    %c0_i32 = arith.constant 0 : i32
    %c0_i32_0 = arith.constant 0 : i32
    %c0_i32_1 = arith.constant 0 : i32
    return %c0_i32, %c0_i32_0 : i32, i32
  }
  func.func @transform_4(%arg0: i32) -> (i32, i32) {
    %c0_i32 = arith.constant 0 : i32
    %c0_i32_0 = arith.constant 0 : i32
    %c0_i32_1 = arith.constant 0 : i32
    return %c0_i32, %c0_i32_0 : i32, i32
  }
  func.func @transform_5(%arg0: i32) -> (i32, i32) {
    %c0_i32 = arith.constant 0 : i32
    %c0_i32_0 = arith.constant 0 : i32
    %c0_i32_1 = arith.constant 0 : i32
    return %c0_i32, %c0_i32_0 : i32, i32
  }
  func.func @transform_6(%arg0: i32) -> (i32, i32) {
    %c0_i32 = arith.constant 0 : i32
    %c0_i32_0 = arith.constant 0 : i32
    %c0_i32_1 = arith.constant 0 : i32
    return %c0_i32, %c0_i32_0 : i32, i32
  }
  func.func @transform_7(%arg0: i32) -> (i32, i32) {
    %c0_i32 = arith.constant 0 : i32
    %c0_i32_0 = arith.constant 0 : i32
    %c0_i32_1 = arith.constant 0 : i32
    return %c0_i32, %c0_i32_0 : i32, i32
  }
  func.func @transform_8(%arg0: i32) -> (i32, i32) {
    %c0_i32 = arith.constant 0 : i32
    %c0_i32_0 = arith.constant 0 : i32
    %c0_i32_1 = arith.constant 0 : i32
    return %c0_i32, %c0_i32_0 : i32, i32
  }
  func.func @transform_9(%arg0: i32) -> (i32, i32) {
    %c0_i32 = arith.constant 0 : i32
    %c0_i32_0 = arith.constant 0 : i32
    %c0_i32_1 = arith.constant 0 : i32
    return %c0_i32, %c0_i32_0 : i32, i32
  }
  func.func @transform_10(%arg0: i32) -> (i32, i32) {
    %c0_i32 = arith.constant 0 : i32
    %c0_i32_0 = arith.constant 0 : i32
    %c0_i32_1 = arith.constant 0 : i32
    return %c0_i32, %c0_i32_0 : i32, i32
  }
  func.func @transform_11(%arg0: i32) -> (i32, i32) {
    %c0_i32 = arith.constant 0 : i32
    %c0_i32_0 = arith.constant 0 : i32
    %c0_i32_1 = arith.constant 0 : i32
    return %c0_i32, %c0_i32_0 : i32, i32
  }
  func.func @transform_12(%arg0: i32) -> (i32, i32) {
    %c0_i32 = arith.constant 0 : i32
    %c0_i32_0 = arith.constant 0 : i32
    %c0_i32_1 = arith.constant 0 : i32
    return %c0_i32, %c0_i32_0 : i32, i32
  }
  func.func @transform_13(%arg0: i32) -> (i32, i32) {
    %c0_i32 = arith.constant 0 : i32
    %c0_i32_0 = arith.constant 0 : i32
    %c0_i32_1 = arith.constant 0 : i32
    return %c0_i32, %c0_i32_0 : i32, i32
  }
  func.func @transform_14(%arg0: i32) -> (i32, i32) {
    %c0_i32 = arith.constant 0 : i32
    %c0_i32_0 = arith.constant 0 : i32
    %c0_i32_1 = arith.constant 0 : i32
    return %c0_i32, %c0_i32_0 : i32, i32
  }
  func.func @transform_15(%arg0: i32) -> (i32, i32) {
    %c0_i32 = arith.constant 0 : i32
    %c0_i32_0 = arith.constant 0 : i32
    %c0_i32_1 = arith.constant 0 : i32
    return %c0_i32, %c0_i32_0 : i32, i32
  }
  func.func @transform_16(%arg0: i32) -> (i32, i32) {
    %c0_i32 = arith.constant 0 : i32
    %c0_i32_0 = arith.constant 0 : i32
    %c0_i32_1 = arith.constant 0 : i32
    return %c0_i32, %c0_i32_0 : i32, i32
  }
  func.func @transform_17(%arg0: i32) -> (i32, i32) {
    %c0_i32 = arith.constant 0 : i32
    %c0_i32_0 = arith.constant 0 : i32
    %c0_i32_1 = arith.constant 0 : i32
    return %c0_i32, %c0_i32_0 : i32, i32
  }
  func.func @transform_18(%arg0: i32) -> (i32, i32) {
    %c0_i32 = arith.constant 0 : i32
    %c0_i32_0 = arith.constant 0 : i32
    %c0_i32_1 = arith.constant 0 : i32
    return %c0_i32, %c0_i32_0 : i32, i32
  }
  func.func @transform_19(%arg0: i32) -> (i32, i32) {
    %c0_i32 = arith.constant 0 : i32
    %c0_i32_0 = arith.constant 0 : i32
    %c0_i32_1 = arith.constant 0 : i32
    return %c0_i32, %c0_i32_0 : i32, i32
  }
  func.func @transform_20(%arg0: i32) -> (i32, i32) {
    %c0_i32 = arith.constant 0 : i32
    %c0_i32_0 = arith.constant 0 : i32
    %c0_i32_1 = arith.constant 0 : i32
    return %c0_i32, %c0_i32_0 : i32, i32
  }
  func.func @transform_21(%arg0: i32) -> (i32, i32) {
    %c0_i32 = arith.constant 0 : i32
    %c0_i32_0 = arith.constant 0 : i32
    %c0_i32_1 = arith.constant 0 : i32
    return %c0_i32, %c0_i32_0 : i32, i32
  }
  func.func @transform_22(%arg0: i32) -> (i32, i32) {
    %c0_i32 = arith.constant 0 : i32
    %c0_i32_0 = arith.constant 0 : i32
    %c0_i32_1 = arith.constant 0 : i32
    return %c0_i32, %c0_i32_0 : i32, i32
  }
  func.func @transform_23(%arg0: i32) -> (i32, i32) {
    %c0_i32 = arith.constant 0 : i32
    %c0_i32_0 = arith.constant 0 : i32
    %c0_i32_1 = arith.constant 0 : i32
    return %c0_i32, %c0_i32_0 : i32, i32
  }
  func.func @transform_24(%arg0: i32) -> (i32, i32, i32) {
    %c0_i32 = arith.constant 0 : i32
    %c0_i32_0 = arith.constant 0 : i32
    %c0_i32_1 = arith.constant 0 : i32
    return %arg0, %c0_i32, %c0_i32_0 : i32, i32, i32
  }
  func.func @transform_25(%arg0: i32) -> (i32, i32, i32) {
    %c0_i32 = arith.constant 0 : i32
    %c0_i32_0 = arith.constant 0 : i32
    %c0_i32_1 = arith.constant 0 : i32
    return %arg0, %c0_i32, %c0_i32_0 : i32, i32, i32
  }
}

</mosaic_0001>

<llo_original>
// kernel: network_vtcc_forward.1
$region0: #{network_vtcc_forward.1}
  #allocation0 [shape = 'u32[]', space=smem, size = 0x4, offset = 0x4, fixed_abs, tag = 'smem constant byte address 0x4 - core index']
  #allocation1 [shape = 'u32[144,128]{1,0:T(1,128)}', space=vmem, size = 0x12000, scoped, tag = 'internal scratch']
  %s0 = inlined_call_operand.vmem [shape: f32[2,128,128], index: 0, kind: input, shape index: {}]
  %s1 = inlined_call_operand.vmem [shape: bf16[128,128], index: 1, kind: input, shape index: {}]
  %s2 = inlined_call_operand.vmem [shape: f32[1,128], index: 2, kind: input, shape index: {}]
  %s3 = inlined_call_operand.vmem [shape: f32[8,128], index: 3, kind: input, shape index: {}]
  %s4 = inlined_call_operand.vmem [shape: bf16[128,128], index: 4, kind: input, shape index: {}]
  %s5 = inlined_call_operand.vmem [shape: f32[1,128], index: 5, kind: input, shape index: {}]
  %s6 = inlined_call_operand.vmem [shape: f32[1,128], index: 6, kind: input, shape index: {}]
  %s7 = inlined_call_operand.vmem [shape: f32[1,128], index: 7, kind: input, shape index: {}]
  %s8 = inlined_call_operand.vmem [shape: bf16[128,128], index: 8, kind: input, shape index: {}]
  %s9 = inlined_call_operand.vmem [shape: f32[1,128], index: 9, kind: input, shape index: {}]
  %s10 = inlined_call_operand.vmem [shape: f32[1,128], index: 10, kind: input, shape index: {}]
  %s11 = inlined_call_operand.vmem [shape: f32[1,128], index: 11, kind: input, shape index: {}]
  %s12 = inlined_call_operand.vmem [shape: bf16[128,128], index: 12, kind: input, shape index: {}]
  %s13 = inlined_call_operand.vmem [shape: f32[1,128], index: 13, kind: input, shape index: {}]
  %s14 = inlined_call_operand.vmem [shape: bf16[128,128], index: 14, kind: input, shape index: {}]
  %s15 = inlined_call_operand.vmem [shape: f32[1,128], index: 15, kind: input, shape index: {}]
  %s16 = inlined_call_operand.vmem [shape: f32[1,128], index: 16, kind: input, shape index: {}]
  %s17 = inlined_call_operand.vmem [shape: f32[1,128], index: 17, kind: input, shape index: {}]
  %s18 = inlined_call_operand.vmem [shape: bf16[128,128], index: 18, kind: input, shape index: {}]
  %s19 = inlined_call_operand.vmem [shape: f32[1,128], index: 19, kind: input, shape index: {}]
  %s20 = inlined_call_operand.vmem [shape: f32[1,128], index: 20, kind: input, shape index: {}]
  %s21 = inlined_call_operand.vmem [shape: f32[1,128], index: 21, kind: input, shape index: {}]
  %s22 = inlined_call_operand.vmem [shape: bf16[128,128], index: 22, kind: input, shape index: {}]
  %s23 = inlined_call_operand.vmem [shape: f32[1,128], index: 23, kind: input, shape index: {}]
  %s24 = inlined_call_operand.vmem [shape: f32[2,8,128], index: 24, kind: output, shape index: {0}]
  %s25 = inlined_call_operand.vmem [shape: f32[2,8,128], index: 25, kind: output, shape index: {1}]
  %26 = xla_tuple %s24, %s25
  %s27 = sld [smem:[#allocation0]]
  $region137: #{network_vtcc_forward.1} parent=0
    _
  %s29 = ssub.s32 1, %s27
  %s30 = scalar_select 0, %s29, %s27
  loop: start=0, step=1, limit=4
  $region2: #{network_vtcc_forward.1} parent=0 // loop_pre_header
    _
  $region3: #{network_vtcc_forward.1} parent=0 // loop_header
    %s32 = sphi 0, %s36
    %p33 = scmp.ge.s32.totalorder %s32, 4
    %s42 = sphi 0, %s44
    %s45 = sphi 0, %s42
    %s46 = sphi 0, %s45
    %s62 = sphi 0, %s46
    %s66 = sphi 0, %s66
    %s68 = sphi 0, %s66
    %s69 = sphi 0, %s68
    %s83 = sphi 0, %s69
    %s87 = sphi 0, %s87
    %s89 = sphi 0, %s87
    %s90 = sphi 0, %s89
    %s104 = sphi 0, %s90
    %s108 = sphi 0, %s108
    %s110 = sphi 0, %s108
    %s111 = sphi 0, %s110
    %s125 = sphi 0, %s111
    %s129 = sphi 0, %s129
    %s131 = sphi 0, %s129
    %s132 = sphi 0, %s131
    %s146 = sphi 0, %s132
    %s150 = sphi 0, %s150
    %s152 = sphi 0, %s150
    %s153 = sphi 0, %s152
    %s167 = sphi 0, %s153
    %s171 = sphi 0, %s171
    %s173 = sphi 0, %s171
    %s174 = sphi 0, %s173
    %s188 = sphi 0, %s174
    %s192 = sphi 0, %s192
    %s194 = sphi 0, %s192
    %s195 = sphi 0, %s194
    %s209 = sphi 0, %s195
    %s213 = sphi 0, %s213
    %s215 = sphi 0, %s213
    %s216 = sphi 0, %s215
    %s230 = sphi 0, %s216
    %s234 = sphi 0, %s234
    %s236 = sphi 0, %s234
    %s237 = sphi 0, %s236
    %s251 = sphi 0, %s237
    %s255 = sphi 0, %s255
    %s257 = sphi 0, %s255
    %s258 = sphi 0, %s257
    %s272 = sphi 0, %s258
    %s276 = sphi 0, %s276
    %s278 = sphi 0, %s276
    %s279 = sphi 0, %s278
    %s293 = sphi 0, %s279
    %s297 = sphi 0, %s297
    %s299 = sphi 0, %s297
    %s300 = sphi 0, %s299
    %s314 = sphi 0, %s300
    %s318 = sphi 0, %s318
    %s320 = sphi 0, %s318
    %s321 = sphi 0, %s320
    %s335 = sphi 0, %s321
    %s339 = sphi 0, %s339
    %s341 = sphi 0, %s339
    %s342 = sphi 0, %s341
    %s356 = sphi 0, %s342
    %s360 = sphi 0, %s360
    %s362 = sphi 0, %s360
    %s363 = sphi 0, %s362
    %s377 = sphi 0, %s363
    %s381 = sphi 0, %s381
    %s383 = sphi 0, %s381
    %s384 = sphi 0, %s383
    %s398 = sphi 0, %s384
    %s402 = sphi 0, %s402
    %s404 = sphi 0, %s402
    %s405 = sphi 0, %s404
    %s419 = sphi 0, %s405
    %s423 = sphi 0, %s423
    %s425 = sphi 0, %s423
    %s426 = sphi 0, %s425
    %s440 = sphi 0, %s426
    %s444 = sphi 0, %s444
    %s446 = sphi 0, %s444
    %s447 = sphi 0, %s446
    %s461 = sphi 0, %s447
    %s465 = sphi 0, %s465
    %s467 = sphi 0, %s465
    %s468 = sphi 0, %s467
    %s482 = sphi 0, %s468
    %s486 = sphi 0, %s486
    %s488 = sphi 0, %s486
    %s489 = sphi 0, %s488
    %s503 = sphi 0, %s489
    %s507 = sphi 0, %s507
    %s509 = sphi 0, %s507
    %s510 = sphi 0, %s509
    %s524 = sphi 0, %s510
    %s528 = sphi 0, %s528
    %s530 = sphi 0, %s528
    %s531 = sphi 0, %s530
    %s545 = sphi 0, %s531
    %s551 = sphi 0, %s553
    %s554 = sphi 0, %s551
    %s555 = sphi 0, %s554
    %s571 = sphi 0, %s555
    %s577 = sphi 0, %s579
    %s580 = sphi 0, %s577
    %s581 = sphi 0, %s580
    %s597 = sphi 0, %s581
  $region4: #{network_vtcc_forward.1} parent=0 // loop_header_branch
    %35 = sbr.rel (%p33) target = $region8
  $region5: #{network_vtcc_forward.1} parent=0 // loop_body
    %s37 = ssub.s32 %s32, 1
    %s38 = ssub.s32 %s32, 2
    %s39 = sadd.s32 %s32, 1
    %s40 = ssub.s32 %s32, %s39
    %p41 = scmp.eq.s32.totalorder %s40, 0
    %s43 = sadd.s32 %s42, 1
    %s44 = scalar_select %p41, %s42, %s43
    %p47 = pneg %p41
    %p48 = scmp.eq.s32.totalorder %s32, 1
    %p49 = por %p47, %p48
    %p50 = scmp.ne.s32.totalorder %s42, %s45
    %p51 = scmp.eq.s32.totalorder %s32, 0
    %p52 = por %p50, %p51
    %p53 = scmp.ne.s32.totalorder %s42, %s45
    %p54 = scmp.eq.s32.totalorder %s37, 1
    %p55 = por %p53, %p54
    %p56 = scmp.ne.s32.totalorder %s45, %s46
    %p57 = scmp.eq.s32.totalorder %s37, 0
    %p58 = por %p56, %p57
    %p59 = scmp.ne.s32.totalorder %s45, %s46
    %p60 = scmp.eq.s32.totalorder %s38, 1
    %p61 = por %p59, %p60
    %p63 = scmp.ne.s32.totalorder %s46, %s62
    %p64 = scmp.eq.s32.totalorder %s38, 0
    %p65 = por %p63, %p64
    %s67 = sadd.s32 %s66, 1
    %p70 = scmp.eq.s32.totalorder %s32, 1
    %p71 = scmp.ne.s32.totalorder %s66, %s68
    %p72 = scmp.eq.s32.totalorder %s32, 0
    %p73 = por %p71, %p72
    %p74 = scmp.ne.s32.totalorder %s66, %s68
    %p75 = scmp.eq.s32.totalorder %s37, 1
    %p76 = por %p74, %p75
    %p77 = scmp.ne.s32.totalorder %s68, %s69
    %p78 = scmp.eq.s32.totalorder %s37, 0
    %p79 = por %p77, %p78
    %p80 = scmp.ne.s32.totalorder %s68, %s69
    %p81 = scmp.eq.s32.totalorder %s38, 1
    %p82 = por %p80, %p81
    %p84 = scmp.ne.s32.totalorder %s69, %s83
    %p85 = scmp.eq.s32.totalorder %s38, 0
    %p86 = por %p84, %p85
    %s88 = sadd.s32 %s87, 1
    %p91 = scmp.eq.s32.totalorder %s32, 1
    %p92 = scmp.ne.s32.totalorder %s87, %s89
    %p93 = scmp.eq.s32.totalorder %s32, 0
    %p94 = por %p92, %p93
    %p95 = scmp.ne.s32.totalorder %s87, %s89
    %p96 = scmp.eq.s32.totalorder %s37, 1
    %p97 = por %p95, %p96
    %p98 = scmp.ne.s32.totalorder %s89, %s90
    %p99 = scmp.eq.s32.totalorder %s37, 0
    %p100 = por %p98, %p99
    %p101 = scmp.ne.s32.totalorder %s89, %s90
    %p102 = scmp.eq.s32.totalorder %s38, 1
    %p103 = por %p101, %p102
    %p105 = scmp.ne.s32.totalorder %s90, %s104
    %p106 = scmp.eq.s32.totalorder %s38, 0
    %p107 = por %p105, %p106
    %s109 = sadd.s32 %s108, 1
    %p112 = scmp.eq.s32.totalorder %s32, 1
    %p113 = scmp.ne.s32.totalorder %s108, %s110
    %p114 = scmp.eq.s32.totalorder %s32, 0
    %p115 = por %p113, %p114
    %p116 = scmp.ne.s32.totalorder %s108, %s110
    %p117 = scmp.eq.s32.totalorder %s37, 1
    %p118 = por %p116, %p117
    %p119 = scmp.ne.s32.totalorder %s110, %s111
    %p120 = scmp.eq.s32.totalorder %s37, 0
    %p121 = por %p119, %p120
    %p122 = scmp.ne.s32.totalorder %s110, %s111
    %p123 = scmp.eq.s32.totalorder %s38, 1
    %p124 = por %p122, %p123
    %p126 = scmp.ne.s32.totalorder %s111, %s125
    %p127 = scmp.eq.s32.totalorder %s38, 0
    %p128 = por %p126, %p127
    %s130 = sadd.s32 %s129, 1
    %p133 = scmp.eq.s32.totalorder %s32, 1
    %p134 = scmp.ne.s32.totalorder %s129, %s131
    %p135 = scmp.eq.s32.totalorder %s32, 0
    %p136 = por %p134, %p135
    %p137 = scmp.ne.s32.totalorder %s129, %s131
    %p138 = scmp.eq.s32.totalorder %s37, 1
    %p139 = por %p137, %p138
    %p140 = scmp.ne.s32.totalorder %s131, %s132
    %p141 = scmp.eq.s32.totalorder %s37, 0
    %p142 = por %p140, %p141
    %p143 = scmp.ne.s32.totalorder %s131, %s132
    %p144 = scmp.eq.s32.totalorder %s38, 1
    %p145 = por %p143, %p144
    %p147 = scmp.ne.s32.totalorder %s132, %s146
    %p148 = scmp.eq.s32.totalorder %s38, 0
    %p149 = por %p147, %p148
    %s151 = sadd.s32 %s150, 1
    %p154 = scmp.eq.s32.totalorder %s32, 1
    %p155 = scmp.ne.s32.totalorder %s150, %s152
    %p156 = scmp.eq.s32.totalorder %s32, 0
    %p157 = por %p155, %p156
    %p158 = scmp.ne.s32.totalorder %s150, %s152
    %p159 = scmp.eq.s32.totalorder %s37, 1
    %p160 = por %p158, %p159
    %p161 = scmp.ne.s32.totalorder %s152, %s153
    %p162 = scmp.eq.s32.totalorder %s37, 0
    %p163 = por %p161, %p162
    %p164 = scmp.ne.s32.totalorder %s152, %s153
    %p165 = scmp.eq.s32.totalorder %s38, 1
    %p166 = por %p164, %p165
    %p168 = scmp.ne.s32.totalorder %s153, %s167
    %p169 = scmp.eq.s32.totalorder %s38, 0
    %p170 = por %p168, %p169
    %s172 = sadd.s32 %s171, 1
    %p175 = scmp.eq.s32.totalorder %s32, 1
    %p176 = scmp.ne.s32.totalorder %s171, %s173
    %p177 = scmp.eq.s32.totalorder %s32, 0
    %p178 = por %p176, %p177
    %p179 = scmp.ne.s32.totalorder %s171, %s173
    %p180 = scmp.eq.s32.totalorder %s37, 1
    %p181 = por %p179, %p180
    %p182 = scmp.ne.s32.totalorder %s173, %s174
    %p183 = scmp.eq.s32.totalorder %s37, 0
    %p184 = por %p182, %p183
    %p185 = scmp.ne.s32.totalorder %s173, %s174
    %p186 = scmp.eq.s32.totalorder %s38, 1
    %p187 = por %p185, %p186
    %p189 = scmp.ne.s32.totalorder %s174, %s188
    %p190 = scmp.eq.s32.totalorder %s38, 0
    %p191 = por %p189, %p190
    %s193 = sadd.s32 %s192, 1
    %p196 = scmp.eq.s32.totalorder %s32, 1
    %p197 = scmp.ne.s32.totalorder %s192, %s194
    %p198 = scmp.eq.s32.totalorder %s32, 0
    %p199 = por %p197, %p198
    %p200 = scmp.ne.s32.totalorder %s192, %s194
    %p201 = scmp.eq.s32.totalorder %s37, 1
    %p202 = por %p200, %p201
    %p203 = scmp.ne.s32.totalorder %s194, %s195
    %p204 = scmp.eq.s32.totalorder %s37, 0
    %p205 = por %p203, %p204
    %p206 = scmp.ne.s32.totalorder %s194, %s195
    %p207 = scmp.eq.s32.totalorder %s38, 1
    %p208 = por %p206, %p207
    %p210 = scmp.ne.s32.totalorder %s195, %s209
    %p211 = scmp.eq.s32.totalorder %s38, 0
    %p212 = por %p210, %p211
    %s214 = sadd.s32 %s213, 1
    %p217 = scmp.eq.s32.totalorder %s32, 1
    %p218 = scmp.ne.s32.totalorder %s213, %s215
    %p219 = scmp.eq.s32.totalorder %s32, 0
    %p220 = por %p218, %p219
    %p221 = scmp.ne.s32.totalorder %s213, %s215
    %p222 = scmp.eq.s32.totalorder %s37, 1
    %p223 = por %p221, %p222
    %p224 = scmp.ne.s32.totalorder %s215, %s216
    %p225 = scmp.eq.s32.totalorder %s37, 0
    %p226 = por %p224, %p225
    %p227 = scmp.ne.s32.totalorder %s215, %s216
    %p228 = scmp.eq.s32.totalorder %s38, 1
    %p229 = por %p227, %p228
    %p231 = scmp.ne.s32.totalorder %s216, %s230
    %p232 = scmp.eq.s32.totalorder %s38, 0
    %p233 = por %p231, %p232
    %s235 = sadd.s32 %s234, 1
    %p238 = scmp.eq.s32.totalorder %s32, 1
    %p239 = scmp.ne.s32.totalorder %s234, %s236
    %p240 = scmp.eq.s32.totalorder %s32, 0
    %p241 = por %p239, %p240
    %p242 = scmp.ne.s32.totalorder %s234, %s236
    %p243 = scmp.eq.s32.totalorder %s37, 1
    %p244 = por %p242, %p243
    %p245 = scmp.ne.s32.totalorder %s236, %s237
    %p246 = scmp.eq.s32.totalorder %s37, 0
    %p247 = por %p245, %p246
    %p248 = scmp.ne.s32.totalorder %s236, %s237
    %p249 = scmp.eq.s32.totalorder %s38, 1
    %p250 = por %p248, %p249
    %p252 = scmp.ne.s32.totalorder %s237, %s251
    %p253 = scmp.eq.s32.totalorder %s38, 0
    %p254 = por %p252, %p253
    %s256 = sadd.s32 %s255, 1
    %p259 = scmp.eq.s32.totalorder %s32, 1
    %p260 = scmp.ne.s32.totalorder %s255, %s257
    %p261 = scmp.eq.s32.totalorder %s32, 0
    %p262 = por %p260, %p261
    %p263 = scmp.ne.s32.totalorder %s255, %s257
    %p264 = scmp.eq.s32.totalorder %s37, 1
    %p265 = por %p263, %p264
    %p266 = scmp.ne.s32.totalorder %s257, %s258
    %p267 = scmp.eq.s32.totalorder %s37, 0
    %p268 = por %p266, %p267
    %p269 = scmp.ne.s32.totalorder %s257, %s258
    %p270 = scmp.eq.s32.totalorder %s38, 1
    %p271 = por %p269, %p270
    %p273 = scmp.ne.s32.totalorder %s258, %s272
    %p274 = scmp.eq.s32.totalorder %s38, 0
    %p275 = por %p273, %p274
    %s277 = sadd.s32 %s276, 1
    %p280 = scmp.eq.s32.totalorder %s32, 1
    %p281 = scmp.ne.s32.totalorder %s276, %s278
    %p282 = scmp.eq.s32.totalorder %s32, 0
    %p283 = por %p281, %p282
    %p284 = scmp.ne.s32.totalorder %s276, %s278
    %p285 = scmp.eq.s32.totalorder %s37, 1
    %p286 = por %p284, %p285
    %p287 = scmp.ne.s32.totalorder %s278, %s279
    %p288 = scmp.eq.s32.totalorder %s37, 0
    %p289 = por %p287, %p288
    %p290 = scmp.ne.s32.totalorder %s278, %s279
    %p291 = scmp.eq.s32.totalorder %s38, 1
    %p292 = por %p290, %p291
    %p294 = scmp.ne.s32.totalorder %s279, %s293
    %p295 = scmp.eq.s32.totalorder %s38, 0
    %p296 = por %p294, %p295
    %s298 = sadd.s32 %s297, 1
    %p301 = scmp.eq.s32.totalorder %s32, 1
    %p302 = scmp.ne.s32.totalorder %s297, %s299
    %p303 = scmp.eq.s32.totalorder %s32, 0
    %p304 = por %p302, %p303
    %p305 = scmp.ne.s32.totalorder %s297, %s299
    %p306 = scmp.eq.s32.totalorder %s37, 1
    %p307 = por %p305, %p306
    %p308 = scmp.ne.s32.totalorder %s299, %s300
    %p309 = scmp.eq.s32.totalorder %s37, 0
    %p310 = por %p308, %p309
    %p311 = scmp.ne.s32.totalorder %s299, %s300
    %p312 = scmp.eq.s32.totalorder %s38, 1
    %p313 = por %p311, %p312
    %p315 = scmp.ne.s32.totalorder %s300, %s314
    %p316 = scmp.eq.s32.totalorder %s38, 0
    %p317 = por %p315, %p316
    %s319 = sadd.s32 %s318, 1
    %p322 = scmp.eq.s32.totalorder %s32, 1
    %p323 = scmp.ne.s32.totalorder %s318, %s320
    %p324 = scmp.eq.s32.totalorder %s32, 0
    %p325 = por %p323, %p324
    %p326 = scmp.ne.s32.totalorder %s318, %s320
    %p327 = scmp.eq.s32.totalorder %s37, 1
    %p328 = por %p326, %p327
    %p329 = scmp.ne.s32.totalorder %s320, %s321
    %p330 = scmp.eq.s32.totalorder %s37, 0
    %p331 = por %p329, %p330
    %p332 = scmp.ne.s32.totalorder %s320, %s321
    %p333 = scmp.eq.s32.totalorder %s38, 1
    %p334 = por %p332, %p333
    %p336 = scmp.ne.s32.totalorder %s321, %s335
    %p337 = scmp.eq.s32.totalorder %s38, 0
    %p338 = por %p336, %p337
    %s340 = sadd.s32 %s339, 1
    %p343 = scmp.eq.s32.totalorder %s32, 1
    %p344 = scmp.ne.s32.totalorder %s339, %s341
    %p345 = scmp.eq.s32.totalorder %s32, 0
    %p346 = por %p344, %p345
    %p347 = scmp.ne.s32.totalorder %s339, %s341
    %p348 = scmp.eq.s32.totalorder %s37, 1
    %p349 = por %p347, %p348
    %p350 = scmp.ne.s32.totalorder %s341, %s342
    %p351 = scmp.eq.s32.totalorder %s37, 0
    %p352 = por %p350, %p351
    %p353 = scmp.ne.s32.totalorder %s341, %s342
    %p354 = scmp.eq.s32.totalorder %s38, 1
    %p355 = por %p353, %p354
    %p357 = scmp.ne.s32.totalorder %s342, %s356
    %p358 = scmp.eq.s32.totalorder %s38, 0
    %p359 = por %p357, %p358
    %s361 = sadd.s32 %s360, 1
    %p364 = scmp.eq.s32.totalorder %s32, 1
    %p365 = scmp.ne.s32.totalorder %s360, %s362
    %p366 = scmp.eq.s32.totalorder %s32, 0
    %p367 = por %p365, %p366
    %p368 = scmp.ne.s32.totalorder %s360, %s362
    %p369 = scmp.eq.s32.totalorder %s37, 1
    %p370 = por %p368, %p369
    %p371 = scmp.ne.s32.totalorder %s362, %s363
    %p372 = scmp.eq.s32.totalorder %s37, 0
    %p373 = por %p371, %p372
    %p374 = scmp.ne.s32.totalorder %s362, %s363
    %p375 = scmp.eq.s32.totalorder %s38, 1
    %p376 = por %p374, %p375
    %p378 = scmp.ne.s32.totalorder %s363, %s377
    %p379 = scmp.eq.s32.totalorder %s38, 0
    %p380 = por %p378, %p379
    %s382 = sadd.s32 %s381, 1
    %p385 = scmp.eq.s32.totalorder %s32, 1
    %p386 = scmp.ne.s32.totalorder %s381, %s383
    %p387 = scmp.eq.s32.totalorder %s32, 0
    %p388 = por %p386, %p387
    %p389 = scmp.ne.s32.totalorder %s381, %s383
    %p390 = scmp.eq.s32.totalorder %s37, 1
    %p391 = por %p389, %p390
    %p392 = scmp.ne.s32.totalorder %s383, %s384
    %p393 = scmp.eq.s32.totalorder %s37, 0
    %p394 = por %p392, %p393
    %p395 = scmp.ne.s32.totalorder %s383, %s384
    %p396 = scmp.eq.s32.totalorder %s38, 1
    %p397 = por %p395, %p396
    %p399 = scmp.ne.s32.totalorder %s384, %s398
    %p400 = scmp.eq.s32.totalorder %s38, 0
    %p401 = por %p399, %p400
    %s403 = sadd.s32 %s402, 1
    %p406 = scmp.eq.s32.totalorder %s32, 1
    %p407 = scmp.ne.s32.totalorder %s402, %s404
    %p408 = scmp.eq.s32.totalorder %s32, 0
    %p409 = por %p407, %p408
    %p410 = scmp.ne.s32.totalorder %s402, %s404
    %p411 = scmp.eq.s32.totalorder %s37, 1
    %p412 = por %p410, %p411
    %p413 = scmp.ne.s32.totalorder %s404, %s405
    %p414 = scmp.eq.s32.totalorder %s37, 0
    %p415 = por %p413, %p414
    %p416 = scmp.ne.s32.totalorder %s404, %s405
    %p417 = scmp.eq.s32.totalorder %s38, 1
    %p418 = por %p416, %p417
    %p420 = scmp.ne.s32.totalorder %s405, %s419
    %p421 = scmp.eq.s32.totalorder %s38, 0
    %p422 = por %p420, %p421
    %s424 = sadd.s32 %s423, 1
    %p427 = scmp.eq.s32.totalorder %s32, 1
    %p428 = scmp.ne.s32.totalorder %s423, %s425
    %p429 = scmp.eq.s32.totalorder %s32, 0
    %p430 = por %p428, %p429
    %p431 = scmp.ne.s32.totalorder %s423, %s425
    %p432 = scmp.eq.s32.totalorder %s37, 1
    %p433 = por %p431, %p432
    %p434 = scmp.ne.s32.totalorder %s425, %s426
    %p435 = scmp.eq.s32.totalorder %s37, 0
    %p436 = por %p434, %p435
    %p437 = scmp.ne.s32.totalorder %s425, %s426
    %p438 = scmp.eq.s32.totalorder %s38, 1
    %p439 = por %p437, %p438
    %p441 = scmp.ne.s32.totalorder %s426, %s440
    %p442 = scmp.eq.s32.totalorder %s38, 0
    %p443 = por %p441, %p442
    %s445 = sadd.s32 %s444, 1
    %p448 = scmp.eq.s32.totalorder %s32, 1
    %p449 = scmp.ne.s32.totalorder %s444, %s446
    %p450 = scmp.eq.s32.totalorder %s32, 0
    %p451 = por %p449, %p450
    %p452 = scmp.ne.s32.totalorder %s444, %s446
    %p453 = scmp.eq.s32.totalorder %s37, 1
    %p454 = por %p452, %p453
    %p455 = scmp.ne.s32.totalorder %s446, %s447
    %p456 = scmp.eq.s32.totalorder %s37, 0
    %p457 = por %p455, %p456
    %p458 = scmp.ne.s32.totalorder %s446, %s447
    %p459 = scmp.eq.s32.totalorder %s38, 1
    %p460 = por %p458, %p459
    %p462 = scmp.ne.s32.totalorder %s447, %s461
    %p463 = scmp.eq.s32.totalorder %s38, 0
    %p464 = por %p462, %p463
    %s466 = sadd.s32 %s465, 1
    %p469 = scmp.eq.s32.totalorder %s32, 1
    %p470 = scmp.ne.s32.totalorder %s465, %s467
    %p471 = scmp.eq.s32.totalorder %s32, 0
    %p472 = por %p470, %p471
    %p473 = scmp.ne.s32.totalorder %s465, %s467
    %p474 = scmp.eq.s32.totalorder %s37, 1
    %p475 = por %p473, %p474
    %p476 = scmp.ne.s32.totalorder %s467, %s468
    %p477 = scmp.eq.s32.totalorder %s37, 0
    %p478 = por %p476, %p477
    %p479 = scmp.ne.s32.totalorder %s467, %s468
    %p480 = scmp.eq.s32.totalorder %s38, 1
    %p481 = por %p479, %p480
    %p483 = scmp.ne.s32.totalorder %s468, %s482
    %p484 = scmp.eq.s32.totalorder %s38, 0
    %p485 = por %p483, %p484
    %s487 = sadd.s32 %s486, 1
    %p490 = scmp.eq.s32.totalorder %s32, 1
    %p491 = scmp.ne.s32.totalorder %s486, %s488
    %p492 = scmp.eq.s32.totalorder %s32, 0
    %p493 = por %p491, %p492
    %p494 = scmp.ne.s32.totalorder %s486, %s488
    %p495 = scmp.eq.s32.totalorder %s37, 1
    %p496 = por %p494, %p495
    %p497 = scmp.ne.s32.totalorder %s488, %s489
    %p498 = scmp.eq.s32.totalorder %s37, 0
    %p499 = por %p497, %p498
    %p500 = scmp.ne.s32.totalorder %s488, %s489
    %p501 = scmp.eq.s32.totalorder %s38, 1
    %p502 = por %p500, %p501
    %p504 = scmp.ne.s32.totalorder %s489, %s503
    %p505 = scmp.eq.s32.totalorder %s38, 0
    %p506 = por %p504, %p505
    %s508 = sadd.s32 %s507, 1
    %p511 = scmp.eq.s32.totalorder %s32, 1
    %p512 = scmp.ne.s32.totalorder %s507, %s509
    %p513 = scmp.eq.s32.totalorder %s32, 0
    %p514 = por %p512, %p513
    %p515 = scmp.ne.s32.totalorder %s507, %s509
    %p516 = scmp.eq.s32.totalorder %s37, 1
    %p517 = por %p515, %p516
    %p518 = scmp.ne.s32.totalorder %s509, %s510
    %p519 = scmp.eq.s32.totalorder %s37, 0
    %p520 = por %p518, %p519
    %p521 = scmp.ne.s32.totalorder %s509, %s510
    %p522 = scmp.eq.s32.totalorder %s38, 1
    %p523 = por %p521, %p522
    %p525 = scmp.ne.s32.totalorder %s510, %s524
    %p526 = scmp.eq.s32.totalorder %s38, 0
    %p527 = por %p525, %p526
    %s529 = sadd.s32 %s528, 1
    %p532 = scmp.eq.s32.totalorder %s32, 1
    %p533 = scmp.ne.s32.totalorder %s528, %s530
    %p534 = scmp.eq.s32.totalorder %s32, 0
    %p535 = por %p533, %p534
    %p536 = scmp.ne.s32.totalorder %s528, %s530
    %p537 = scmp.eq.s32.totalorder %s37, 1
    %p538 = por %p536, %p537
    %p539 = scmp.ne.s32.totalorder %s530, %s531
    %p540 = scmp.eq.s32.totalorder %s37, 0
    %p541 = por %p539, %p540
    %p542 = scmp.ne.s32.totalorder %s530, %s531
    %p543 = scmp.eq.s32.totalorder %s38, 1
    %p544 = por %p542, %p543
    %p546 = scmp.ne.s32.totalorder %s531, %s545
    %p547 = scmp.eq.s32.totalorder %s38, 0
    %p548 = por %p546, %p547
    %s549 = ssub.s32 %s32, %s39
    %p550 = scmp.eq.s32.totalorder %s549, 0
    %s552 = sadd.s32 %s551, 1
    %s553 = scalar_select %p550, %s551, %s552
    %p556 = pneg %p550
    %p557 = scmp.eq.s32.totalorder %s32, 1
    %p558 = por %p556, %p557
    %p559 = scmp.ne.s32.totalorder %s551, %s554
    %p560 = scmp.eq.s32.totalorder %s32, 0
    %p561 = por %p559, %p560
    %p562 = scmp.ne.s32.totalorder %s551, %s554
    %p563 = scmp.eq.s32.totalorder %s37, 1
    %p564 = por %p562, %p563
    %p565 = scmp.ne.s32.totalorder %s554, %s555
    %p566 = scmp.eq.s32.totalorder %s37, 0
    %p567 = por %p565, %p566
    %p568 = scmp.ne.s32.totalorder %s554, %s555
    %p569 = scmp.eq.s32.totalorder %s38, 1
    %p570 = por %p568, %p569
    %p572 = scmp.ne.s32.totalorder %s555, %s571
    %p573 = scmp.eq.s32.totalorder %s38, 0
    %p574 = por %p572, %p573
    %s575 = ssub.s32 %s32, %s39
    %p576 = scmp.eq.s32.totalorder %s575, 0
    %s578 = sadd.s32 %s577, 1
    %s579 = scalar_select %p576, %s577, %s578
    %p582 = pneg %p576
    %p583 = scmp.eq.s32.totalorder %s32, 1
    %p584 = por %p582, %p583
    %p585 = scmp.ne.s32.totalorder %s577, %s580
    %p586 = scmp.eq.s32.totalorder %s32, 0
    %p587 = por %p585, %p586
    %p588 = scmp.ne.s32.totalorder %s577, %s580
    %p589 = scmp.eq.s32.totalorder %s37, 1
    %p590 = por %p588, %p589
    %p591 = scmp.ne.s32.totalorder %s580, %s581
    %p592 = scmp.eq.s32.totalorder %s37, 0
    %p593 = por %p591, %p592
    %p594 = scmp.ne.s32.totalorder %s580, %s581
    %p595 = scmp.eq.s32.totalorder %s38, 1
    %p596 = por %p594, %p595
    %p598 = scmp.ne.s32.totalorder %s581, %s597
    %p599 = scmp.eq.s32.totalorder %s38, 0
    %p600 = por %p598, %p599
    %p601 = scmp.le.s32.totalorder 1, %s32
    %p602 = scmp.lt.s32.totalorder %s32, 3
    %p603 = pnand %p601, %p602
    %p604 = pneg %p603
    // Predicated region
    $region9: #{network_vtcc_forward.1} parent=5 // pred_check
      _
    $region10: #{network_vtcc_forward.1} parent=5 // pred_check_branch
      %606 = sbr.rel (%p603) target = $region12
    $region11: #{network_vtcc_forward.1} parent=5 // pred_region
      %s607 = ssub.s32 %s32, 1
      // Predicated region
      $region13: #{network_vtcc_forward.1} parent=11 // pred_check
        %p608 = pneg %p79
      $region14: #{network_vtcc_forward.1} parent=11 // pred_check_branch
        %610 = sbr.rel (%p608) target = $region16
      $region15: #{network_vtcc_forward.1} parent=11 // pred_region
        _
      $region16: #{network_vtcc_forward.1} parent=11 // pred_fallthru
        _
      // Predicated region
      $region17: #{network_vtcc_forward.1} parent=11 // pred_check
        %p611 = pneg %p100
      $region18: #{network_vtcc_forward.1} parent=11 // pred_check_branch
        %613 = sbr.rel (%p611) target = $region20
      $region19: #{network_vtcc_forward.1} parent=11 // pred_region
        _
      $region20: #{network_vtcc_forward.1} parent=11 // pred_fallthru
        _
      // Predicated region
      $region21: #{network_vtcc_forward.1} parent=11 // pred_check
        %p614 = pneg %p121
      $region22: #{network_vtcc_forward.1} parent=11 // pred_check_branch
        %616 = sbr.rel (%p614) target = $region24
      $region23: #{network_vtcc_forward.1} parent=11 // pred_region
        _
      $region24: #{network_vtcc_forward.1} parent=11 // pred_fallthru
        _
      // Predicated region
      $region25: #{network_vtcc_forward.1} parent=11 // pred_check
        %p617 = pneg %p142
      $region26: #{network_vtcc_forward.1} parent=11 // pred_check_branch
        %619 = sbr.rel (%p617) target = $region28
      $region27: #{network_vtcc_forward.1} parent=11 // pred_region
        _
      $region28: #{network_vtcc_forward.1} parent=11 // pred_fallthru
        _
      // Predicated region
      $region29: #{network_vtcc_forward.1} parent=11 // pred_check
        %p620 = pneg %p163
      $region30: #{network_vtcc_forward.1} parent=11 // pred_check_branch
        %622 = sbr.rel (%p620) target = $region32
      $region31: #{network_vtcc_forward.1} parent=11 // pred_region
        _
      $region32: #{network_vtcc_forward.1} parent=11 // pred_fallthru
        _
      // Predicated region
      $region33: #{network_vtcc_forward.1} parent=11 // pred_check
        %p623 = pneg %p184
      $region34: #{network_vtcc_forward.1} parent=11 // pred_check_branch
        %625 = sbr.rel (%p623) target = $region36
      $region35: #{network_vtcc_forward.1} parent=11 // pred_region
        _
      $region36: #{network_vtcc_forward.1} parent=11 // pred_fallthru
        _
      // Predicated region
      $region37: #{network_vtcc_forward.1} parent=11 // pred_check
        %p626 = pneg %p205
      $region38: #{network_vtcc_forward.1} parent=11 // pred_check_branch
        %628 = sbr.rel (%p626) target = $region40
      $region39: #{network_vtcc_forward.1} parent=11 // pred_region
        _
      $region40: #{network_vtcc_forward.1} parent=11 // pred_fallthru
        _
      // Predicated region
      $region41: #{network_vtcc_forward.1} parent=11 // pred_check
        %p629 = pneg %p226
      $region42: #{network_vtcc_forward.1} parent=11 // pred_check_branch
        %631 = sbr.rel (%p629) target = $region44
      $region43: #{network_vtcc_forward.1} parent=11 // pred_region
        _
      $region44: #{network_vtcc_forward.1} parent=11 // pred_fallthru
        _
      // Predicated region
      $region45: #{network_vtcc_forward.1} parent=11 // pred_check
        %p632 = pneg %p247
      $region46: #{network_vtcc_forward.1} parent=11 // pred_check_branch
        %634 = sbr.rel (%p632) target = $region48
      $region47: #{network_vtcc_forward.1} parent=11 // pred_region
        _
      $region48: #{network_vtcc_forward.1} parent=11 // pred_fallthru
        _
      // Predicated region
      $region49: #{network_vtcc_forward.1} parent=11 // pred_check
        %p635 = pneg %p268
      $region50: #{network_vtcc_forward.1} parent=11 // pred_check_branch
        %637 = sbr.rel (%p635) target = $region52
      $region51: #{network_vtcc_forward.1} parent=11 // pred_region
        _
      $region52: #{network_vtcc_forward.1} parent=11 // pred_fallthru
        _
      // Predicated region
      $region53: #{network_vtcc_forward.1} parent=11 // pred_check
        %p638 = pneg %p289
      $region54: #{network_vtcc_forward.1} parent=11 // pred_check_branch
        %640 = sbr.rel (%p638) target = $region56
      $region55: #{network_vtcc_forward.1} parent=11 // pred_region
        _
      $region56: #{network_vtcc_forward.1} parent=11 // pred_fallthru
        _
      // Predicated region
      $region57: #{network_vtcc_forward.1} parent=11 // pred_check
        %p641 = pneg %p310
      $region58: #{network_vtcc_forward.1} parent=11 // pred_check_branch
        %643 = sbr.rel (%p641) target = $region60
      $region59: #{network_vtcc_forward.1} parent=11 // pred_region
        _
      $region60: #{network_vtcc_forward.1} parent=11 // pred_fallthru
        _
      // Predicated region
      $region61: #{network_vtcc_forward.1} parent=11 // pred_check
        %p644 = pneg %p331
      $region62: #{network_vtcc_forward.1} parent=11 // pred_check_branch
        %646 = sbr.rel (%p644) target = $region64
      $region63: #{network_vtcc_forward.1} parent=11 // pred_region
        _
      $region64: #{network_vtcc_forward.1} parent=11 // pred_fallthru
        _
      // Predicated region
      $region65: #{network_vtcc_forward.1} parent=11 // pred_check
        %p647 = pneg %p352
      $region66: #{network_vtcc_forward.1} parent=11 // pred_check_branch
        %649 = sbr.rel (%p647) target = $region68
      $region67: #{network_vtcc_forward.1} parent=11 // pred_region
        _
      $region68: #{network_vtcc_forward.1} parent=11 // pred_fallthru
        _
      // Predicated region
      $region69: #{network_vtcc_forward.1} parent=11 // pred_check
        %p650 = pneg %p373
      $region70: #{network_vtcc_forward.1} parent=11 // pred_check_branch
        %652 = sbr.rel (%p650) target = $region72
      $region71: #{network_vtcc_forward.1} parent=11 // pred_region
        _
      $region72: #{network_vtcc_forward.1} parent=11 // pred_fallthru
        _
      // Predicated region
      $region73: #{network_vtcc_forward.1} parent=11 // pred_check
        %p653 = pneg %p394
      $region74: #{network_vtcc_forward.1} parent=11 // pred_check_branch
        %655 = sbr.rel (%p653) target = $region76
      $region75: #{network_vtcc_forward.1} parent=11 // pred_region
        _
      $region76: #{network_vtcc_forward.1} parent=11 // pred_fallthru
        _
      // Predicated region
      $region77: #{network_vtcc_forward.1} parent=11 // pred_check
        %p656 = pneg %p415
      $region78: #{network_vtcc_forward.1} parent=11 // pred_check_branch
        %658 = sbr.rel (%p656) target = $region80
      $region79: #{network_vtcc_forward.1} parent=11 // pred_region
        _
      $region80: #{network_vtcc_forward.1} parent=11 // pred_fallthru
        _
      // Predicated region
      $region81: #{network_vtcc_forward.1} parent=11 // pred_check
        %p659 = pneg %p436
      $region82: #{network_vtcc_forward.1} parent=11 // pred_check_branch
        %661 = sbr.rel (%p659) target = $region84
      $region83: #{network_vtcc_forward.1} parent=11 // pred_region
        _
      $region84: #{network_vtcc_forward.1} parent=11 // pred_fallthru
        _
      // Predicated region
      $region85: #{network_vtcc_forward.1} parent=11 // pred_check
        %p662 = pneg %p457
      $region86: #{network_vtcc_forward.1} parent=11 // pred_check_branch
        %664 = sbr.rel (%p662) target = $region88
      $region87: #{network_vtcc_forward.1} parent=11 // pred_region
        _
      $region88: #{network_vtcc_forward.1} parent=11 // pred_fallthru
        _
      // Predicated region
      $region89: #{network_vtcc_forward.1} parent=11 // pred_check
        %p665 = pneg %p478
      $region90: #{network_vtcc_forward.1} parent=11 // pred_check_branch
        %667 = sbr.rel (%p665) target = $region92
      $region91: #{network_vtcc_forward.1} parent=11 // pred_region
        _
      $region92: #{network_vtcc_forward.1} parent=11 // pred_fallthru
        _
      // Predicated region
      $region93: #{network_vtcc_forward.1} parent=11 // pred_check
        %p668 = pneg %p499
      $region94: #{network_vtcc_forward.1} parent=11 // pred_check_branch
        %670 = sbr.rel (%p668) target = $region96
      $region95: #{network_vtcc_forward.1} parent=11 // pred_region
        _
      $region96: #{network_vtcc_forward.1} parent=11 // pred_fallthru
        _
      // Predicated region
      $region97: #{network_vtcc_forward.1} parent=11 // pred_check
        %p671 = pneg %p520
      $region98: #{network_vtcc_forward.1} parent=11 // pred_check_branch
        %673 = sbr.rel (%p671) target = $region100
      $region99: #{network_vtcc_forward.1} parent=11 // pred_region
        _
      $region100: #{network_vtcc_forward.1} parent=11 // pred_fallthru
        _
      // Predicated region
      $region101: #{network_vtcc_forward.1} parent=11 // pred_check
        %p674 = pneg %p541
      $region102: #{network_vtcc_forward.1} parent=11 // pred_check_branch
        %676 = sbr.rel (%p674) target = $region104
      $region103: #{network_vtcc_forward.1} parent=11 // pred_region
        _
      $region104: #{network_vtcc_forward.1} parent=11 // pred_fallthru
        _
    $region12: #{network_vtcc_forward.1} parent=5 // pred_fallthru
      _
    %p677 = scmp.lt.s32.totalorder %s32, 2
    // Predicated region
    $region105: #{network_vtcc_forward.1} parent=5 // pred_check
      %p678 = pneg %p677
    $region106: #{network_vtcc_forward.1} parent=5 // pred_check_branch
      %680 = sbr.rel (%p678) target = $region108
    $region107: #{network_vtcc_forward.1} parent=5 // pred_region
      // Predicated region
      $region109: #{network_vtcc_forward.1} parent=107 // pred_check
        %p681 = pneg %p52
      $region110: #{network_vtcc_forward.1} parent=107 // pred_check_branch
        %683 = sbr.rel (%p681) target = $region112
      $region111: #{network_vtcc_forward.1} parent=107 // pred_region
        %p684 = scmp.lt.s32.totalorder %s32, 1
        %s685 = scalar_select %p684, %s32, 1
        %s686 = smul.addr %s685, 16
        %s687 = smul.addr %s686, 8
        %s688 = scalar_lea.vmem %s0, %s687
      $region112: #{network_vtcc_forward.1} parent=107 // pred_fallthru
        _
    $region108: #{network_vtcc_forward.1} parent=5 // pred_fallthru
      _
    %p689 = scmp.le.s32.totalorder 1, %s32
    %p690 = scmp.lt.s32.totalorder %s32, 3
    %p691 = pnand %p689, %p690
    %p692 = pneg %p691
    // Predicated region
    $region113: #{network_vtcc_forward.1} parent=5 // pred_check
      _
    $region114: #{network_vtcc_forward.1} parent=5 // pred_check_branch
      %694 = sbr.rel (%p691) target = $region116
    $region115: #{network_vtcc_forward.1} parent=5 // pred_region
      %s695 = ssub.s32 %s32, 1
      %p696 = scmp.lt.s32.totalorder %s37, 1
      %s697 = scalar_select %p696, %s37, 1
      %s698 = smul.addr %s697, 16
      %s699 = smul.addr %s698, 8
      %s700 = scalar_lea.vmem %s0, %s699
      %p701 = pneg %p58
      %p702 = pneg %p55
      %p703 = pneg %p79
      %p704 = pneg %p76
      %p705 = pneg %p100
      %p706 = pneg %p97
      %p707 = pneg %p121
      %p708 = pneg %p118
      %p709 = pneg %p142
      %p710 = pneg %p139
      %p711 = pneg %p163
      %p712 = pneg %p160
      %p713 = pneg %p184
      %p714 = pneg %p181
      %p715 = pneg %p205
      %p716 = pneg %p202
      %p717 = pneg %p226
      %p718 = pneg %p223
      %p719 = pneg %p247
      %p720 = pneg %p244
      %p721 = pneg %p268
      %p722 = pneg %p265
      %p723 = pneg %p289
      %p724 = pneg %p286
      %p725 = pneg %p310
      %p726 = pneg %p307
      %p727 = pneg %p331
      %p728 = pneg %p328
      %p729 = pneg %p352
      %p730 = pneg %p349
      %p731 = pneg %p373
      %p732 = pneg %p370
      %p733 = pneg %p394
      %p734 = pneg %p391
      %p735 = pneg %p415
      %p736 = pneg %p412
      %p737 = pneg %p436
      %p738 = pneg %p433
      %p739 = pneg %p457
      %p740 = pneg %p454
      %p741 = pneg %p478
      %p742 = pneg %p475
      %p743 = pneg %p499
      %p744 = pneg %p496
      %p745 = pneg %p520
      %p746 = pneg %p517
      %p747 = pneg %p541
      %p748 = pneg %p538
      %p749 = pneg %p567
      %p750 = pneg %p564
      %p751 = scmp.lt.s32.totalorder %s37, 1
      %s752 = scalar_select %p751, %s37, 1
      %s753 = smul.addr %s752, 8
      %s754 = scalar_lea.vmem %s24, %s753
      %p755 = pneg %p593
      %p756 = pneg %p590
      %p757 = scmp.lt.s32.totalorder %s37, 1
      %s758 = scalar_select %p757, %s37, 1
      %s759 = smul.addr %s758, 8
      %s760 = scalar_lea.vmem %s25, %s759
      %p761 = scmp.lt.s32.totalorder %s37, 1
      %s762 = scalar_select %p761, %s37, 1
      %s763 = smul.addr %s762, 16
      %s764 = smul.addr %s763, 8
      %s765 = scalar_lea.vmem %s0, %s764
      %p766 = scmp.lt.s32.totalorder %s37, 1
      %s767 = scalar_select %p766, %s37, 1
      %s768 = smul.addr %s767, 8
      %s769 = scalar_lea.vmem %s24, %s768
      %p770 = scmp.lt.s32.totalorder %s37, 1
      %s771 = scalar_select %p770, %s37, 1
      %s772 = smul.addr %s771, 8
      %s773 = scalar_lea.vmem %s25, %s772
      %v775 = vld [vmem:[%s765] sm:$0xff]
      %v776 = vld [vmem:[%s765 + $0x8] sm:$0xff]
      %v777 = vld [vmem:[%s765 + $0x10] sm:$0xff]
      %v778 = vld [vmem:[%s765 + $0x18] sm:$0xff]
      %v779 = vld [vmem:[%s765 + $0x20] sm:$0xff]
      %v780 = vld [vmem:[%s765 + $0x28] sm:$0xff]
      %v781 = vld [vmem:[%s765 + $0x30] sm:$0xff]
      %v782 = vld [vmem:[%s765 + $0x38] sm:$0xff]
      %v783 = vld [vmem:[%s765 + $0x40] sm:$0xff]
      %v784 = vld [vmem:[%s765 + $0x48] sm:$0xff]
      %v785 = vld [vmem:[%s765 + $0x50] sm:$0xff]
      %v786 = vld [vmem:[%s765 + $0x58] sm:$0xff]
      %v787 = vld [vmem:[%s765 + $0x60] sm:$0xff]
      %v788 = vld [vmem:[%s765 + $0x68] sm:$0xff]
      %v789 = vld [vmem:[%s765 + $0x70] sm:$0xff]
      %v790 = vld [vmem:[%s765 + $0x78] sm:$0xff]
      %v791 = vpack.c.bf16 %v776, %v775
      %v792 = vpack.c.bf16 %v778, %v777
      %v793 = vpack.c.bf16 %v780, %v779
      %v794 = vpack.c.bf16 %v782, %v781
      %v795 = vpack.c.bf16 %v784, %v783
      %v796 = vpack.c.bf16 %v786, %v785
      %v797 = vpack.c.bf16 %v788, %v787
      %v798 = vpack.c.bf16 %v790, %v789
      %v799 = vld [vmem:[%s1] sm:$0xf]
      %v800 = vld [vmem:[%s1 + $0x4] sm:$0xf]
      %v801 = vld [vmem:[%s1 + $0x8] sm:$0xf]
      %v802 = vld [vmem:[%s1 + $0xc] sm:$0xf]
      %v803 = vld [vmem:[%s1 + $0x10] sm:$0xf]
      %v804 = vld [vmem:[%s1 + $0x14] sm:$0xf]
      %v805 = vld [vmem:[%s1 + $0x18] sm:$0xf]
      %v806 = vld [vmem:[%s1 + $0x1c] sm:$0xf]
      %v807 = vld [vmem:[%s1 + $0x20] sm:$0xf]
      %v808 = vld [vmem:[%s1 + $0x24] sm:$0xf]
      %v809 = vld [vmem:[%s1 + $0x28] sm:$0xf]
      %v810 = vld [vmem:[%s1 + $0x2c] sm:$0xf]
      %v811 = vld [vmem:[%s1 + $0x30] sm:$0xf]
      %v812 = vld [vmem:[%s1 + $0x34] sm:$0xf]
      %v813 = vld [vmem:[%s1 + $0x38] sm:$0xf]
      %v814 = vld [vmem:[%s1 + $0x3c] sm:$0xf]
      %v815 = vld [vmem:[%s2] sm:$0x1]
      %v817 = vlaneseq
      %v818 = vshrl.u32 %v817, 7
      %v819 = vsub.s32 0, %v818
      %v820 = vrot.slane %v815, %v819
      %v838 = vunpack.c.l.b16 %v799
      %v839 = vunpack.c.l.b16 %v800
      %v840 = vunpack.c.l.b16 %v801
      %v841 = vunpack.c.l.b16 %v802
      %v842 = vunpack.c.l.b16 %v803
      %v843 = vunpack.c.l.b16 %v804
      %v844 = vunpack.c.l.b16 %v805
      %v845 = vunpack.c.l.b16 %v806
      %v846 = vunpack.c.l.b16 %v807
      %v847 = vunpack.c.l.b16 %v808
      %v848 = vunpack.c.l.b16 %v809
      %v849 = vunpack.c.l.b16 %v810
      %v850 = vunpack.c.l.b16 %v811
      %v851 = vunpack.c.l.b16 %v812
      %v852 = vunpack.c.l.b16 %v813
      %v853 = vunpack.c.l.b16 %v814
      %v854 = vpack.c.b16 %v839, %v838
      %v855 = vpack.c.b16 %v841, %v840
      %v856 = vpack.c.b16 %v843, %v842
      %v857 = vpack.c.b16 %v845, %v844
      %v858 = vpack.c.b16 %v847, %v846
      %v859 = vpack.c.b16 %v849, %v848
      %v860 = vpack.c.b16 %v851, %v850
      %v861 = vpack.c.b16 %v853, %v852
      %870 = vmatprep.subr.bf16.mxu0 0
      %871 = vmatpush1.bf16.msra.mxu0 %v854
      %872 = vmatprep.subr.bf16.mxu0 0
      %873 = vmatpush1.bf16.msra.mxu0 %v855
      %874 = vmatprep.subr.bf16.mxu0 0
      %875 = vmatpush1.bf16.msra.mxu0 %v856
      %876 = vmatprep.subr.bf16.mxu0 0
      %877 = vmatpush1.bf16.msra.mxu0 %v857
      %878 = vmatprep.subr.bf16.mxu0 0
      %879 = vmatpush1.bf16.msra.mxu0 %v858
      %880 = vmatprep.subr.bf16.mxu0 0
      %881 = vmatpush1.bf16.msra.mxu0 %v859
      %882 = vmatprep.subr.bf16.mxu0 0
      %883 = vmatpush1.bf16.msra.mxu0 %v860
      %884 = vmatprep.subr.bf16.mxu0 0
      %885 = vmatpush1.bf16.msra.mxu0 %v861
      %886 = vmatprep.subr.bf16.mxu0 0
      %887 = vmatpush1.bf16.msra.mxu0 0
      %888 = vmatprep.subr.bf16.mxu0 0
      %889 = vmatpush1.bf16.msra.mxu0 0
      %890 = vmatprep.subr.bf16.mxu0 0
      %891 = vmatpush1.bf16.msra.mxu0 0
      %892 = vmatprep.subr.bf16.mxu0 0
      %893 = vmatpush1.bf16.msra.mxu0 0
      %894 = vmatprep.subr.bf16.mxu0 0
      %895 = vmatpush1.bf16.msra.mxu0 0
      %896 = vmatprep.subr.bf16.mxu0 0
      %897 = vmatpush1.bf16.msra.mxu0 0
      %898 = vmatprep.subr.bf16.mxu0 0
      %899 = vmatpush1.bf16.msra.mxu0 0
      %900 = vmatprep.subr.bf16.mxu0 0
      %901 = vmatpush1.bf16.msra.mxu0 0
      %902 = vmatprep.mubr.bf16.mxu0 0
      %903 = vmatmul.mubr.bf16.gmra.mrb[0].mxu0 %v791
      %v904 = vpop.f32.mrb[0].mxu0
      %v905 = vadd.f32 %v820, %v904
      %v906 = vpop.f32.mrb[0].mxu0
      %v907 = vpop.f32.mrb[0].mxu0
      %v908 = vadd.f32 %v820, %v907
      %v909 = vpop.f32.mrb[0].mxu0
      %910 = vmatprep.mubr.bf16.mxu0 0
      %911 = vmatmul.mubr.bf16.gmra.mrb[0].mxu0 %v792
      %v912 = vpop.f32.mrb[0].mxu0
      %v913 = vadd.f32 %v820, %v912
      %v914 = vpop.f32.mrb[0].mxu0
      %v915 = vpop.f32.mrb[0].mxu0
      %v916 = vadd.f32 %v820, %v915
      %v917 = vpop.f32.mrb[0].mxu0
      %918 = vmatprep.mubr.bf16.mxu0 0
      %919 = vmatmul.mubr.bf16.gmra.mrb[0].mxu0 %v793
      %v920 = vpop.f32.mrb[0].mxu0
      %v921 = vadd.f32 %v820, %v920
      %v922 = vpop.f32.mrb[0].mxu0
      %v923 = vpop.f32.mrb[0].mxu0
      %v924 = vadd.f32 %v820, %v923
      %v925 = vpop.f32.mrb[0].mxu0
      %926 = vmatprep.mubr.bf16.mxu0 0
      %927 = vmatmul.mubr.bf16.gmra.mrb[0].mxu0 %v794
      %v928 = vpop.f32.mrb[0].mxu0
      %v929 = vadd.f32 %v820, %v928
      %v930 = vpop.f32.mrb[0].mxu0
      %v931 = vpop.f32.mrb[0].mxu0
      %v932 = vadd.f32 %v820, %v931
      %v933 = vpop.f32.mrb[0].mxu0
      %934 = vmatprep.mubr.bf16.mxu0 0
      %935 = vmatmul.mubr.bf16.gmra.mrb[0].mxu0 %v795
      %v936 = vpop.f32.mrb[0].mxu0
      %v937 = vadd.f32 %v820, %v936
      %v938 = vpop.f32.mrb[0].mxu0
      %v939 = vpop.f32.mrb[0].mxu0
      %v940 = vadd.f32 %v820, %v939
      %v941 = vpop.f32.mrb[0].mxu0
      %942 = vmatprep.mubr.bf16.mxu0 0
      %943 = vmatmul.mubr.bf16.gmra.mrb[0].mxu0 %v796
      %v944 = vpop.f32.mrb[0].mxu0
      %v945 = vadd.f32 %v820, %v944
      %v946 = vpop.f32.mrb[0].mxu0
      %v947 = vpop.f32.mrb[0].mxu0
      %v948 = vadd.f32 %v820, %v947
      %v949 = vpop.f32.mrb[0].mxu0
      %950 = vmatprep.mubr.bf16.mxu0 0
      %951 = vmatmul.mubr.bf16.gmra.mrb[0].mxu0 %v797
      %v952 = vpop.f32.mrb[0].mxu0
      %v953 = vadd.f32 %v820, %v952
      %v954 = vpop.f32.mrb[0].mxu0
      %v955 = vpop.f32.mrb[0].mxu0
      %v956 = vadd.f32 %v820, %v955
      %v957 = vpop.f32.mrb[0].mxu0
      %958 = vmatprep.mubr.bf16.mxu0 0
      %959 = vmatmul.mubr.bf16.gmra.mrb[0].mxu0 %v798
      %v960 = vpop.f32.mrb[0].mxu0
      %v961 = vadd.f32 %v820, %v960
      %v962 = vpop.f32.mrb[0].mxu0
      %v963 = vpop.f32.mrb[0].mxu0
      %v964 = vadd.f32 %v820, %v963
      %v965 = vpop.f32.mrb[0].mxu0
      %966 = vdwg.mxu0
      %v967 = vmul.f32 %v905, %v905
      %v968 = vmul.f32 %v908, %v908
      %v969 = vmul.f32 %v913, %v913
      %v970 = vmul.f32 %v916, %v916
      %v971 = vmul.f32 %v921, %v921
      %v972 = vmul.f32 %v924, %v924
      %v973 = vmul.f32 %v929, %v929
      %v974 = vmul.f32 %v932, %v932
      %v975 = vmul.f32 %v937, %v937
      %v976 = vmul.f32 %v940, %v940
      %v977 = vmul.f32 %v945, %v945
      %v978 = vmul.f32 %v948, %v948
      %v979 = vmul.f32 %v953, %v953
      %v980 = vmul.f32 %v956, %v956
      %v981 = vmul.f32 %v961, %v961
      %v982 = vmul.f32 %v964, %v964
      %v983 = vmul.f32 %v905, %v967
      %v984 = vmul.f32 %v908, %v968
      %v985 = vmul.f32 %v913, %v969
      %v986 = vmul.f32 %v916, %v970
      %v987 = vmul.f32 %v921, %v971
      %v988 = vmul.f32 %v924, %v972
      %v989 = vmul.f32 %v929, %v973
      %v990 = vmul.f32 %v932, %v974
      %v991 = vmul.f32 %v937, %v975
      %v992 = vmul.f32 %v940, %v976
      %v993 = vmul.f32 %v945, %v977
      %v994 = vmul.f32 %v948, %v978
      %v995 = vmul.f32 %v953, %v979
      %v996 = vmul.f32 %v956, %v980
      %v997 = vmul.f32 %v961, %v981
      %v998 = vmul.f32 %v964, %v982
      %v999 = vmul.f32 %v983, 0.044715
      %v1000 = vmul.f32 %v984, 0.044715
      %v1001 = vmul.f32 %v985, 0.044715
      %v1002 = vmul.f32 %v986, 0.044715
      %v1003 = vmul.f32 %v987, 0.044715
      %v1004 = vmul.f32 %v988, 0.044715
      %v1005 = vmul.f32 %v989, 0.044715
      %v1006 = vmul.f32 %v990, 0.044715
      %v1007 = vmul.f32 %v991, 0.044715
      %v1008 = vmul.f32 %v992, 0.044715
      %v1009 = vmul.f32 %v993, 0.044715
      %v1010 = vmul.f32 %v994, 0.044715
      %v1011 = vmul.f32 %v995, 0.044715
      %v1012 = vmul.f32 %v996, 0.044715
      %v1013 = vmul.f32 %v997, 0.044715
      %v1014 = vmul.f32 %v998, 0.044715
      %v1015 = vadd.f32 %v905, %v999
      %v1016 = vadd.f32 %v908, %v1000
      %v1017 = vadd.f32 %v913, %v1001
      %v1018 = vadd.f32 %v916, %v1002
      %v1019 = vadd.f32 %v921, %v1003
      %v1020 = vadd.f32 %v924, %v1004
      %v1021 = vadd.f32 %v929, %v1005
      %v1022 = vadd.f32 %v932, %v1006
      %v1023 = vadd.f32 %v937, %v1007
      %v1024 = vadd.f32 %v940, %v1008
      %v1025 = vadd.f32 %v945, %v1009
      %v1026 = vadd.f32 %v948, %v1010
      %v1027 = vadd.f32 %v953, %v1011
      %v1028 = vadd.f32 %v956, %v1012
      %v1029 = vadd.f32 %v961, %v1013
      %v1030 = vadd.f32 %v964, %v1014
      %v1031 = vmul.f32 %v1015, 0.7978846
      %v1032 = vmul.f32 %v1016, 0.7978846
      %v1033 = vmul.f32 %v1017, 0.7978846
      %v1034 = vmul.f32 %v1018, 0.7978846
      %v1035 = vmul.f32 %v1019, 0.7978846
      %v1036 = vmul.f32 %v1020, 0.7978846
      %v1037 = vmul.f32 %v1021, 0.7978846
      %v1038 = vmul.f32 %v1022, 0.7978846
      %v1039 = vmul.f32 %v1023, 0.7978846
      %v1040 = vmul.f32 %v1024, 0.7978846
      %v1041 = vmul.f32 %v1025, 0.7978846
      %v1042 = vmul.f32 %v1026, 0.7978846
      %v1043 = vmul.f32 %v1027, 0.7978846
      %v1044 = vmul.f32 %v1028, 0.7978846
      %v1045 = vmul.f32 %v1029, 0.7978846
      %v1046 = vmul.f32 %v1030, 0.7978846
      %v1047 = vtanh.pop %v1031
      %v1048 = vtanh.pop %v1032
      %v1049 = vtanh.pop %v1033
      %v1050 = vtanh.pop %v1034
      %v1051 = vtanh.pop %v1035
      %v1052 = vtanh.pop %v1036
      %v1053 = vtanh.pop %v1037
      %v1054 = vtanh.pop %v1038
      %v1055 = vtanh.pop %v1039
      %v1056 = vtanh.pop %v1040
      %v1057 = vtanh.pop %v1041
      %v1058 = vtanh.pop %v1042
      %v1059 = vtanh.pop %v1043
      %v1060 = vtanh.pop %v1044
      %v1061 = vtanh.pop %v1045
      %v1062 = vtanh.pop %v1046
      %v1063 = vadd.f32 %v1047, 1.0
      %v1064 = vadd.f32 %v1048, 1.0
      %v1065 = vadd.f32 %v1049, 1.0
      %v1066 = vadd.f32 %v1050, 1.0
      %v1067 = vadd.f32 %v1051, 1.0
      %v1068 = vadd.f32 %v1052, 1.0
      %v1069 = vadd.f32 %v1053, 1.0
      %v1070 = vadd.f32 %v1054, 1.0
      %v1071 = vadd.f32 %v1055, 1.0
      %v1072 = vadd.f32 %v1056, 1.0
      %v1073 = vadd.f32 %v1057, 1.0
      %v1074 = vadd.f32 %v1058, 1.0
      %v1075 = vadd.f32 %v1059, 1.0
      %v1076 = vadd.f32 %v1060, 1.0
      %v1077 = vadd.f32 %v1061, 1.0
      %v1078 = vadd.f32 %v1062, 1.0
      %v1079 = vmul.f32 %v1063, 0.5
      %v1080 = vmul.f32 %v1064, 0.5
      %v1081 = vmul.f32 %v1065, 0.5
      %v1082 = vmul.f32 %v1066, 0.5
      %v1083 = vmul.f32 %v1067, 0.5
      %v1084 = vmul.f32 %v1068, 0.5
      %v1085 = vmul.f32 %v1069, 0.5
      %v1086 = vmul.f32 %v1070, 0.5
      %v1087 = vmul.f32 %v1071, 0.5
      %v1088 = vmul.f32 %v1072, 0.5
      %v1089 = vmul.f32 %v1073, 0.5
      %v1090 = vmul.f32 %v1074, 0.5
      %v1091 = vmul.f32 %v1075, 0.5
      %v1092 = vmul.f32 %v1076, 0.5
      %v1093 = vmul.f32 %v1077, 0.5
      %v1094 = vmul.f32 %v1078, 0.5
      %v1095 = vmul.f32 %v905, %v1079
      %v1096 = vmul.f32 %v908, %v1080
      %v1097 = vmul.f32 %v913, %v1081
      %v1098 = vmul.f32 %v916, %v1082
      %v1099 = vmul.f32 %v921, %v1083
      %v1100 = vmul.f32 %v924, %v1084
      %v1101 = vmul.f32 %v929, %v1085
      %v1102 = vmul.f32 %v932, %v1086
      %v1103 = vmul.f32 %v937, %v1087
      %v1104 = vmul.f32 %v940, %v1088
      %v1105 = vmul.f32 %v945, %v1089
      %v1106 = vmul.f32 %v948, %v1090
      %v1107 = vmul.f32 %v953, %v1091
      %v1108 = vmul.f32 %v956, %v1092
      %v1109 = vmul.f32 %v961, %v1093
      %v1110 = vmul.f32 %v964, %v1094
      %v1111 = vld [vmem:[%s3] sm:$0xff]
      %1112 = vmatprep.subr.mxu0 0.0
      %1113 = vmatpush1.msra.mxu0 %v1095
      %1114 = vmatprep.subr.mxu0 0.0
      %1115 = vmatpush1.msra.mxu0 %v1096
      %1116 = vmatprep.subr.mxu0 0.0
      %1117 = vmatpush1.msra.mxu0 %v1097
      %1118 = vmatprep.subr.mxu0 0.0
      %1119 = vmatpush1.msra.mxu0 %v1098
      %1120 = vmatprep.subr.mxu0 0.0
      %1121 = vmatpush1.msra.mxu0 %v1099
      %1122 = vmatprep.subr.mxu0 0.0
      %1123 = vmatpush1.msra.mxu0 %v1100
      %1124 = vmatprep.subr.mxu0 0.0
      %1125 = vmatpush1.msra.mxu0 %v1101
      %1126 = vmatprep.subr.mxu0 0.0
      %1127 = vmatpush1.msra.mxu0 %v1102
      %1128 = vmatprep.subr.mxu0 0.0
      %1129 = vmatpush1.msra.mxu0 %v1103
      %1130 = vmatprep.subr.mxu0 0.0
      %1131 = vmatpush1.msra.mxu0 %v1104
      %1132 = vmatprep.subr.mxu0 0.0
      %1133 = vmatpush1.msra.mxu0 %v1105
      %1134 = vmatprep.subr.mxu0 0.0
      %1135 = vmatpush1.msra.mxu0 %v1106
      %1136 = vmatprep.subr.mxu0 0.0
      %1137 = vmatpush1.msra.mxu0 %v1107
      %1138 = vmatprep.subr.mxu0 0.0
      %1139 = vmatpush1.msra.mxu0 %v1108
      %1140 = vmatprep.subr.mxu0 0.0
      %1141 = vmatpush1.msra.mxu0 %v1109
      %1142 = vmatprep.subr.mxu0 0.0
      %1143 = vmatpush1.msra.mxu0 %v1110
      %1144 = vmatprep.subr.mxu0 0.0
      %1145 = vmatpush1.msra.mxu0 0.0
      %1146 = vmatprep.subr.mxu0 0.0
      %1147 = vmatpush1.msra.mxu0 0.0
      %1148 = vmatprep.subr.mxu0 0.0
      %1149 = vmatpush1.msra.mxu0 0.0
      %1150 = vmatprep.subr.mxu0 0.0
      %1151 = vmatpush1.msra.mxu0 0.0
      %1152 = vmatprep.subr.mxu0 0.0
      %1153 = vmatpush1.msra.mxu0 0.0
      %1154 = vmatprep.subr.mxu0 0.0
      %1155 = vmatpush1.msra.mxu0 0.0
      %1156 = vmatprep.subr.mxu0 0.0
      %1157 = vmatpush1.msra.mxu0 0.0
      %1158 = vmatprep.subr.mxu0 0.0
      %1159 = vmatpush1.msra.mxu0 0.0
      %1160 = vmatprep.subr.mxu0 0.0
      %1161 = vmatpush1.msra.mxu0 0.0
      %1162 = vmatprep.subr.mxu0 0.0
      %1163 = vmatpush1.msra.mxu0 0.0
      %1164 = vmatprep.subr.mxu0 0.0
      %1165 = vmatpush1.msra.mxu0 0.0
      %1166 = vmatprep.subr.mxu0 0.0
      %1167 = vmatpush1.msra.mxu0 0.0
      %1168 = vmatprep.subr.mxu0 0.0
      %1169 = vmatpush1.msra.mxu0 0.0
      %1170 = vmatprep.subr.mxu0 0.0
      %1171 = vmatpush1.msra.mxu0 0.0
      %1172 = vmatprep.subr.mxu0 0.0
      %1173 = vmatpush1.msra.mxu0 0.0
      %1174 = vmatprep.subr.mxu0 0.0
      %1175 = vmatpush1.msra.mxu0 0.0
      %1176 = vmatprep.mubr.f32.mxu0 0.0
      %1177 = vmatmul.mubr.f32.gmra.mrb[0].mxu0 %v1111
      %v1178 = vpop.f32.mrb[0].mxu0
      %v1179 = vadd.f32 0.0, %v1178
      %v1180 = vpop.f32.mrb[0].mxu0
      %1181 = vdwg.mxu0
      %v1182 = vpack.c.bf16 %v1179, %v1179
      %v1183 = vld [vmem:[%s4] sm:$0xf]
      %v1184 = vld [vmem:[%s4 + $0x4] sm:$0xf]
      %v1185 = vld [vmem:[%s4 + $0x8] sm:$0xf]
      %v1186 = vld [vmem:[%s4 + $0xc] sm:$0xf]
      %v1187 = vld [vmem:[%s4 + $0x10] sm:$0xf]
      %v1188 = vld [vmem:[%s4 + $0x14] sm:$0xf]
      %v1189 = vld [vmem:[%s4 + $0x18] sm:$0xf]
      %v1190 = vld [vmem:[%s4 + $0x1c] sm:$0xf]
      %v1191 = vld [vmem:[%s4 + $0x20] sm:$0xf]
      %v1192 = vld [vmem:[%s4 + $0x24] sm:$0xf]
      %v1193 = vld [vmem:[%s4 + $0x28] sm:$0xf]
      %v1194 = vld [vmem:[%s4 + $0x2c] sm:$0xf]
      %v1195 = vld [vmem:[%s4 + $0x30] sm:$0xf]
      %v1196 = vld [vmem:[%s4 + $0x34] sm:$0xf]
      %v1197 = vld [vmem:[%s4 + $0x38] sm:$0xf]
      %v1198 = vld [vmem:[%s4 + $0x3c] sm:$0xf]
      %v1199 = vld [vmem:[%s5] sm:$0x1]
      %v1201 = vlaneseq
      %v1202 = vshrl.u32 %v1201, 7
      %v1203 = vsub.s32 0, %v1202
      %v1204 = vrot.slane %v1199, %v1203
      %v1222 = vunpack.c.l.b16 %v1183
      %v1223 = vunpack.c.l.b16 %v1184
      %v1224 = vunpack.c.l.b16 %v1185
      %v1225 = vunpack.c.l.b16 %v1186
      %v1226 = vunpack.c.l.b16 %v1187
      %v1227 = vunpack.c.l.b16 %v1188
      %v1228 = vunpack.c.l.b16 %v1189
      %v1229 = vunpack.c.l.b16 %v1190
      %v1230 = vunpack.c.l.b16 %v1191
      %v1231 = vunpack.c.l.b16 %v1192
      %v1232 = vunpack.c.l.b16 %v1193
      %v1233 = vunpack.c.l.b16 %v1194
      %v1234 = vunpack.c.l.b16 %v1195
      %v1235 = vunpack.c.l.b16 %v1196
      %v1236 = vunpack.c.l.b16 %v1197
      %v1237 = vunpack.c.l.b16 %v1198
      %v1238 = vpack.c.b16 %v1223, %v1222
      %v1239 = vpack.c.b16 %v1225, %v1224
      %v1240 = vpack.c.b16 %v1227, %v1226
      %v1241 = vpack.c.b16 %v1229, %v1228
      %v1242 = vpack.c.b16 %v1231, %v1230
      %v1243 = vpack.c.b16 %v1233, %v1232
      %v1244 = vpack.c.b16 %v1235, %v1234
      %v1245 = vpack.c.b16 %v1237, %v1236
      %1254 = vmatprep.subr.bf16.mxu0 0
      %1255 = vmatpush1.bf16.msra.mxu0 %v1238
      %1256 = vmatprep.subr.bf16.mxu0 0
      %1257 = vmatpush1.bf16.msra.mxu0 %v1239
      %1258 = vmatprep.subr.bf16.mxu0 0
      %1259 = vmatpush1.bf16.msra.mxu0 %v1240
      %1260 = vmatprep.subr.bf16.mxu0 0
      %1261 = vmatpush1.bf16.msra.mxu0 %v1241
      %1262 = vmatprep.subr.bf16.mxu0 0
      %1263 = vmatpush1.bf16.msra.mxu0 %v1242
      %1264 = vmatprep.subr.bf16.mxu0 0
      %1265 = vmatpush1.bf16.msra.mxu0 %v1243
      %1266 = vmatprep.subr.bf16.mxu0 0
      %1267 = vmatpush1.bf16.msra.mxu0 %v1244
      %1268 = vmatprep.subr.bf16.mxu0 0
      %1269 = vmatpush1.bf16.msra.mxu0 %v1245
      %1270 = vmatprep.subr.bf16.mxu0 0
      %1271 = vmatpush1.bf16.msra.mxu0 0
      %1272 = vmatprep.subr.bf16.mxu0 0
      %1273 = vmatpush1.bf16.msra.mxu0 0
      %1274 = vmatprep.subr.bf16.mxu0 0
      %1275 = vmatpush1.bf16.msra.mxu0 0
      %1276 = vmatprep.subr.bf16.mxu0 0
      %1277 = vmatpush1.bf16.msra.mxu0 0
      %1278 = vmatprep.subr.bf16.mxu0 0
      %1279 = vmatpush1.bf16.msra.mxu0 0
      %1280 = vmatprep.subr.bf16.mxu0 0
      %1281 = vmatpush1.bf16.msra.mxu0 0
      %1282 = vmatprep.subr.bf16.mxu0 0
      %1283 = vmatpush1.bf16.msra.mxu0 0
      %1284 = vmatprep.subr.bf16.mxu0 0
      %1285 = vmatpush1.bf16.msra.mxu0 0
      %1286 = vmatprep.mubr.bf16.mxu0 0
      %1287 = vmatmul.mubr.bf16.gmra.mrb[0].mxu0 %v1182
      %v1288 = vpop.f32.mrb[0].mxu0
      %v1289 = vadd.f32 %v1204, %v1288
      %v1290 = vpop.f32.mrb[0].mxu0
      %v1291 = vpop.f32.mrb[0].mxu0
      %v1292 = vpop.f32.mrb[0].mxu0
      %1293 = vdwg.mxu0
      %v1294 = vld [vmem:[%s6] sm:$0x1]
      %v1295 = vld [vmem:[%s7] sm:$0x1]
      %v1296 = vrot.slane %v1289, 4
      %v1297 = vadd.f32 %v1289, %v1296
      %v1298 = vrot.slane %v1297, 2
      %v1299 = vadd.f32 %v1297, %v1298
      %v1300 = vrot.slane %v1299, 1
      %v1301 = vadd.f32 %v1299, %v1300
      %v1302 = vmul.f32 %v1289, %v1289
      %v1303 = vrot.slane %v1302, 4
      %v1304 = vadd.f32 %v1302, %v1303
      %v1305 = vrot.slane %v1304, 2
      %v1306 = vadd.f32 %v1304, %v1305
      %v1307 = vrot.slane %v1306, 1
      %v1308 = vadd.f32 %v1306, %v1307
      %v1309 = vmul.f32 %v1301, 0.125
      %v1310 = vmul.f32 %v1308, 0.125
      %v1311 = vmul.f32 %v1309, %v1309
      %v1312 = vsub.f32 %v1310, %v1311
      %v1313 = vmax.f32 %v1312, 0.0
      %v1314 = vsub.f32 %v1289, %v1309
      %v1315 = vadd.f32 %v1313, 1e-05
      %v1316 = vrsqrt.pop %v1315
      %v1317 = vmul.f32 %v1314, %v1316
      %v1319 = vlaneseq
      %v1320 = vshrl.u32 %v1319, 7
      %v1321 = vsub.s32 0, %v1320
      %v1322 = vrot.slane %v1294, %v1321
      %v1324 = vmul.f32 %v1317, %v1322
      %v1326 = vlaneseq
      %v1327 = vshrl.u32 %v1326, 7
      %v1328 = vsub.s32 0, %v1327
      %v1329 = vrot.slane %v1295, %v1328
      %v1331 = vadd.f32 %v1324, %v1329
      %v1332 = vmax.f32 %v1331, 0.0
      %v1333 = vpack.c.bf16 %v1332, %v1332
      %v1334 = vld [vmem:[%s8] sm:$0xf]
      %v1335 = vld [vmem:[%s8 + $0x4] sm:$0xf]
      %v1336 = vld [vmem:[%s8 + $0x8] sm:$0xf]
      %v1337 = vld [vmem:[%s8 + $0xc] sm:$0xf]
      %v1338 = vld [vmem:[%s8 + $0x10] sm:$0xf]
      %v1339 = vld [vmem:[%s8 + $0x14] sm:$0xf]
      %v1340 = vld [vmem:[%s8 + $0x18] sm:$0xf]
      %v1341 = vld [vmem:[%s8 + $0x1c] sm:$0xf]
      %v1342 = vld [vmem:[%s8 + $0x20] sm:$0xf]
      %v1343 = vld [vmem:[%s8 + $0x24] sm:$0xf]
      %v1344 = vld [vmem:[%s8 + $0x28] sm:$0xf]
      %v1345 = vld [vmem:[%s8 + $0x2c] sm:$0xf]
      %v1346 = vld [vmem:[%s8 + $0x30] sm:$0xf]
      %v1347 = vld [vmem:[%s8 + $0x34] sm:$0xf]
      %v1348 = vld [vmem:[%s8 + $0x38] sm:$0xf]
      %v1349 = vld [vmem:[%s8 + $0x3c] sm:$0xf]
      %v1350 = vld [vmem:[%s9] sm:$0x1]
      %v1352 = vlaneseq
      %v1353 = vshrl.u32 %v1352, 7
      %v1354 = vsub.s32 0, %v1353
      %v1355 = vrot.slane %v1350, %v1354
      %v1373 = vunpack.c.l.b16 %v1334
      %v1374 = vunpack.c.l.b16 %v1335
      %v1375 = vunpack.c.l.b16 %v1336
      %v1376 = vunpack.c.l.b16 %v1337
      %v1377 = vunpack.c.l.b16 %v1338
      %v1378 = vunpack.c.l.b16 %v1339
      %v1379 = vunpack.c.l.b16 %v1340
      %v1380 = vunpack.c.l.b16 %v1341
      %v1381 = vunpack.c.l.b16 %v1342
      %v1382 = vunpack.c.l.b16 %v1343
      %v1383 = vunpack.c.l.b16 %v1344
      %v1384 = vunpack.c.l.b16 %v1345
      %v1385 = vunpack.c.l.b16 %v1346
      %v1386 = vunpack.c.l.b16 %v1347
      %v1387 = vunpack.c.l.b16 %v1348
      %v1388 = vunpack.c.l.b16 %v1349
      %v1389 = vpack.c.b16 %v1374, %v1373
      %v1390 = vpack.c.b16 %v1376, %v1375
      %v1391 = vpack.c.b16 %v1378, %v1377
      %v1392 = vpack.c.b16 %v1380, %v1379
      %v1393 = vpack.c.b16 %v1382, %v1381
      %v1394 = vpack.c.b16 %v1384, %v1383
      %v1395 = vpack.c.b16 %v1386, %v1385
      %v1396 = vpack.c.b16 %v1388, %v1387
      %1405 = vmatprep.subr.bf16.mxu0 0
      %1406 = vmatpush1.bf16.msra.mxu0 %v1389
      %1407 = vmatprep.subr.bf16.mxu0 0
      %1408 = vmatpush1.bf16.msra.mxu0 %v1390
      %1409 = vmatprep.subr.bf16.mxu0 0
      %1410 = vmatpush1.bf16.msra.mxu0 %v1391
      %1411 = vmatprep.subr.bf16.mxu0 0
      %1412 = vmatpush1.bf16.msra.mxu0 %v1392
      %1413 = vmatprep.subr.bf16.mxu0 0
      %1414 = vmatpush1.bf16.msra.mxu0 %v1393
      %1415 = vmatprep.subr.bf16.mxu0 0
      %1416 = vmatpush1.bf16.msra.mxu0 %v1394
      %1417 = vmatprep.subr.bf16.mxu0 0
      %1418 = vmatpush1.bf16.msra.mxu0 %v1395
      %1419 = vmatprep.subr.bf16.mxu0 0
      %1420 = vmatpush1.bf16.msra.mxu0 %v1396
      %1421 = vmatprep.subr.bf16.mxu0 0
      %1422 = vmatpush1.bf16.msra.mxu0 0
      %1423 = vmatprep.subr.bf16.mxu0 0
      %1424 = vmatpush1.bf16.msra.mxu0 0
      %1425 = vmatprep.subr.bf16.mxu0 0
      %1426 = vmatpush1.bf16.msra.mxu0 0
      %1427 = vmatprep.subr.bf16.mxu0 0
      %1428 = vmatpush1.bf16.msra.mxu0 0
      %1429 = vmatprep.subr.bf16.mxu0 0
      %1430 = vmatpush1.bf16.msra.mxu0 0
      %1431 = vmatprep.subr.bf16.mxu0 0
      %1432 = vmatpush1.bf16.msra.mxu0 0
      %1433 = vmatprep.subr.bf16.mxu0 0
      %1434 = vmatpush1.bf16.msra.mxu0 0
      %1435 = vmatprep.subr.bf16.mxu0 0
      %1436 = vmatpush1.bf16.msra.mxu0 0
      %1437 = vmatprep.mubr.bf16.mxu0 0
      %1438 = vmatmul.mubr.bf16.gmra.mrb[0].mxu0 %v1333
      %v1439 = vpop.f32.mrb[0].mxu0
      %v1440 = vadd.f32 %v1355, %v1439
      %v1441 = vpop.f32.mrb[0].mxu0
      %v1442 = vpop.f32.mrb[0].mxu0
      %v1443 = vpop.f32.mrb[0].mxu0
      %1444 = vdwg.mxu0
      %v1445 = vld [vmem:[%s10] sm:$0x1]
      %v1446 = vld [vmem:[%s11] sm:$0x1]
      %v1447 = vrot.slane %v1440, 4
      %v1448 = vadd.f32 %v1440, %v1447
      %v1449 = vrot.slane %v1448, 2
      %v1450 = vadd.f32 %v1448, %v1449
      %v1451 = vrot.slane %v1450, 1
      %v1452 = vadd.f32 %v1450, %v1451
      %v1453 = vmul.f32 %v1440, %v1440
      %v1454 = vrot.slane %v1453, 4
      %v1455 = vadd.f32 %v1453, %v1454
      %v1456 = vrot.slane %v1455, 2
      %v1457 = vadd.f32 %v1455, %v1456
      %v1458 = vrot.slane %v1457, 1
      %v1459 = vadd.f32 %v1457, %v1458
      %v1460 = vmul.f32 %v1452, 0.125
      %v1461 = vmul.f32 %v1459, 0.125
      %v1462 = vmul.f32 %v1460, %v1460
      %v1463 = vsub.f32 %v1461, %v1462
      %v1464 = vmax.f32 %v1463, 0.0
      %v1465 = vsub.f32 %v1440, %v1460
      %v1466 = vadd.f32 %v1464, 1e-05
      %v1467 = vrsqrt.pop %v1466
      %v1468 = vmul.f32 %v1465, %v1467
      %v1470 = vlaneseq
      %v1471 = vshrl.u32 %v1470, 7
      %v1472 = vsub.s32 0, %v1471
      %v1473 = vrot.slane %v1445, %v1472
      %v1475 = vmul.f32 %v1468, %v1473
      %v1477 = vlaneseq
      %v1478 = vshrl.u32 %v1477, 7
      %v1479 = vsub.s32 0, %v1478
      %v1480 = vrot.slane %v1446, %v1479
      %v1482 = vadd.f32 %v1475, %v1480
      %v1483 = vmax.f32 %v1482, 0.0
      %v1484 = vpack.c.bf16 %v1483, %v1483
      %v1485 = vld [vmem:[%s12] sm:$0xf]
      %v1486 = vld [vmem:[%s12 + $0x4] sm:$0xf]
      %v1487 = vld [vmem:[%s12 + $0x8] sm:$0xf]
      %v1488 = vld [vmem:[%s12 + $0xc] sm:$0xf]
      %v1489 = vld [vmem:[%s12 + $0x10] sm:$0xf]
      %v1490 = vld [vmem:[%s12 + $0x14] sm:$0xf]
      %v1491 = vld [vmem:[%s12 + $0x18] sm:$0xf]
      %v1492 = vld [vmem:[%s12 + $0x1c] sm:$0xf]
      %v1493 = vld [vmem:[%s12 + $0x20] sm:$0xf]
      %v1494 = vld [vmem:[%s12 + $0x24] sm:$0xf]
      %v1495 = vld [vmem:[%s12 + $0x28] sm:$0xf]
      %v1496 = vld [vmem:[%s12 + $0x2c] sm:$0xf]
      %v1497 = vld [vmem:[%s12 + $0x30] sm:$0xf]
      %v1498 = vld [vmem:[%s12 + $0x34] sm:$0xf]
      %v1499 = vld [vmem:[%s12 + $0x38] sm:$0xf]
      %v1500 = vld [vmem:[%s12 + $0x3c] sm:$0xf]
      %v1501 = vld [vmem:[%s13] sm:$0x1]
      %v1503 = vlaneseq
      %v1504 = vshrl.u32 %v1503, 7
      %v1505 = vsub.s32 0, %v1504
      %v1506 = vrot.slane %v1501, %v1505
      %v1524 = vunpack.c.l.b16 %v1485
      %v1525 = vunpack.c.l.b16 %v1486
      %v1526 = vunpack.c.l.b16 %v1487
      %v1527 = vunpack.c.l.b16 %v1488
      %v1528 = vunpack.c.l.b16 %v1489
      %v1529 = vunpack.c.l.b16 %v1490
      %v1530 = vunpack.c.l.b16 %v1491
      %v1531 = vunpack.c.l.b16 %v1492
      %v1532 = vunpack.c.l.b16 %v1493
      %v1533 = vunpack.c.l.b16 %v1494
      %v1534 = vunpack.c.l.b16 %v1495
      %v1535 = vunpack.c.l.b16 %v1496
      %v1536 = vunpack.c.l.b16 %v1497
      %v1537 = vunpack.c.l.b16 %v1498
      %v1538 = vunpack.c.l.b16 %v1499
      %v1539 = vunpack.c.l.b16 %v1500
      %v1540 = vpack.c.b16 %v1525, %v1524
      %v1541 = vpack.c.b16 %v1527, %v1526
      %v1542 = vpack.c.b16 %v1529, %v1528
      %v1543 = vpack.c.b16 %v1531, %v1530
      %v1544 = vpack.c.b16 %v1533, %v1532
      %v1545 = vpack.c.b16 %v1535, %v1534
      %v1546 = vpack.c.b16 %v1537, %v1536
      %v1547 = vpack.c.b16 %v1539, %v1538
      %1556 = vmatprep.subr.bf16.mxu0 0
      %1557 = vmatpush1.bf16.msra.mxu0 %v1540
      %1558 = vmatprep.subr.bf16.mxu0 0
      %1559 = vmatpush1.bf16.msra.mxu0 %v1541
      %1560 = vmatprep.subr.bf16.mxu0 0
      %1561 = vmatpush1.bf16.msra.mxu0 %v1542
      %1562 = vmatprep.subr.bf16.mxu0 0
      %1563 = vmatpush1.bf16.msra.mxu0 %v1543
      %1564 = vmatprep.subr.bf16.mxu0 0
      %1565 = vmatpush1.bf16.msra.mxu0 %v1544
      %1566 = vmatprep.subr.bf16.mxu0 0
      %1567 = vmatpush1.bf16.msra.mxu0 %v1545
      %1568 = vmatprep.subr.bf16.mxu0 0
      %1569 = vmatpush1.bf16.msra.mxu0 %v1546
      %1570 = vmatprep.subr.bf16.mxu0 0
      %1571 = vmatpush1.bf16.msra.mxu0 %v1547
      %1572 = vmatprep.subr.bf16.mxu0 0
      %1573 = vmatpush1.bf16.msra.mxu0 0
      %1574 = vmatprep.subr.bf16.mxu0 0
      %1575 = vmatpush1.bf16.msra.mxu0 0
      %1576 = vmatprep.subr.bf16.mxu0 0
      %1577 = vmatpush1.bf16.msra.mxu0 0
      %1578 = vmatprep.subr.bf16.mxu0 0
      %1579 = vmatpush1.bf16.msra.mxu0 0
      %1580 = vmatprep.subr.bf16.mxu0 0
      %1581 = vmatpush1.bf16.msra.mxu0 0
      %1582 = vmatprep.subr.bf16.mxu0 0
      %1583 = vmatpush1.bf16.msra.mxu0 0
      %1584 = vmatprep.subr.bf16.mxu0 0
      %1585 = vmatpush1.bf16.msra.mxu0 0
      %1586 = vmatprep.subr.bf16.mxu0 0
      %1587 = vmatpush1.bf16.msra.mxu0 0
      %1588 = vmatprep.mubr.bf16.mxu0 0
      %1589 = vmatmul.mubr.bf16.gmra.mrb[0].mxu0 %v1484
      %v1590 = vpop.f32.mrb[0].mxu0
      %v1591 = vadd.f32 %v1506, %v1590
      %v1592 = vpop.f32.mrb[0].mxu0
      %v1593 = vpop.f32.mrb[0].mxu0
      %v1594 = vpop.f32.mrb[0].mxu0
      %1595 = vdwg.mxu0
      %v1596 = vmul.f32 %v1591, %v1591
      %1597 = vadd.xlane.f32.xlu0 %v1596
      %v1598 = vpop.xlane.xlu0 %1597
      %v1599 = vmax.f32 %v1598, 1e-24
      %v1600 = vrsqrt.pop %v1599
      %v1601 = vmul.f32 %v1591, %v1600
      %1602 = vst [vmem:[%s769] sm:$0xff] %v1601
      %v1603 = vld [vmem:[%s14] sm:$0xf]
      %v1604 = vld [vmem:[%s14 + $0x4] sm:$0xf]
      %v1605 = vld [vmem:[%s14 + $0x8] sm:$0xf]
      %v1606 = vld [vmem:[%s14 + $0xc] sm:$0xf]
      %v1607 = vld [vmem:[%s14 + $0x10] sm:$0xf]
      %v1608 = vld [vmem:[%s14 + $0x14] sm:$0xf]
      %v1609 = vld [vmem:[%s14 + $0x18] sm:$0xf]
      %v1610 = vld [vmem:[%s14 + $0x1c] sm:$0xf]
      %v1611 = vld [vmem:[%s14 + $0x20] sm:$0xf]
      %v1612 = vld [vmem:[%s14 + $0x24] sm:$0xf]
      %v1613 = vld [vmem:[%s14 + $0x28] sm:$0xf]
      %v1614 = vld [vmem:[%s14 + $0x2c] sm:$0xf]
      %v1615 = vld [vmem:[%s14 + $0x30] sm:$0xf]
      %v1616 = vld [vmem:[%s14 + $0x34] sm:$0xf]
      %v1617 = vld [vmem:[%s14 + $0x38] sm:$0xf]
      %v1618 = vld [vmem:[%s14 + $0x3c] sm:$0xf]
      %v1619 = vld [vmem:[%s15] sm:$0x1]
      %v1621 = vlaneseq
      %v1622 = vshrl.u32 %v1621, 7
      %v1623 = vsub.s32 0, %v1622
      %v1624 = vrot.slane %v1619, %v1623
      %v1642 = vunpack.c.l.b16 %v1603
      %v1643 = vunpack.c.l.b16 %v1604
      %v1644 = vunpack.c.l.b16 %v1605
      %v1645 = vunpack.c.l.b16 %v1606
      %v1646 = vunpack.c.l.b16 %v1607
      %v1647 = vunpack.c.l.b16 %v1608
      %v1648 = vunpack.c.l.b16 %v1609
      %v1649 = vunpack.c.l.b16 %v1610
      %v1650 = vunpack.c.l.b16 %v1611
      %v1651 = vunpack.c.l.b16 %v1612
      %v1652 = vunpack.c.l.b16 %v1613
      %v1653 = vunpack.c.l.b16 %v1614
      %v1654 = vunpack.c.l.b16 %v1615
      %v1655 = vunpack.c.l.b16 %v1616
      %v1656 = vunpack.c.l.b16 %v1617
      %v1657 = vunpack.c.l.b16 %v1618
      %v1658 = vpack.c.b16 %v1643, %v1642
      %v1659 = vpack.c.b16 %v1645, %v1644
      %v1660 = vpack.c.b16 %v1647, %v1646
      %v1661 = vpack.c.b16 %v1649, %v1648
      %v1662 = vpack.c.b16 %v1651, %v1650
      %v1663 = vpack.c.b16 %v1653, %v1652
      %v1664 = vpack.c.b16 %v1655, %v1654
      %v1665 = vpack.c.b16 %v1657, %v1656
      %1674 = vmatprep.subr.bf16.mxu0 0
      %1675 = vmatpush1.bf16.msra.mxu0 %v1658
      %1676 = vmatprep.subr.bf16.mxu0 0
      %1677 = vmatpush1.bf16.msra.mxu0 %v1659
      %1678 = vmatprep.subr.bf16.mxu0 0
      %1679 = vmatpush1.bf16.msra.mxu0 %v1660
      %1680 = vmatprep.subr.bf16.mxu0 0
      %1681 = vmatpush1.bf16.msra.mxu0 %v1661
      %1682 = vmatprep.subr.bf16.mxu0 0
      %1683 = vmatpush1.bf16.msra.mxu0 %v1662
      %1684 = vmatprep.subr.bf16.mxu0 0
      %1685 = vmatpush1.bf16.msra.mxu0 %v1663
      %1686 = vmatprep.subr.bf16.mxu0 0
      %1687 = vmatpush1.bf16.msra.mxu0 %v1664
      %1688 = vmatprep.subr.bf16.mxu0 0
      %1689 = vmatpush1.bf16.msra.mxu0 %v1665
      %1690 = vmatprep.subr.bf16.mxu0 0
      %1691 = vmatpush1.bf16.msra.mxu0 0
      %1692 = vmatprep.subr.bf16.mxu0 0
      %1693 = vmatpush1.bf16.msra.mxu0 0
      %1694 = vmatprep.subr.bf16.mxu0 0
      %1695 = vmatpush1.bf16.msra.mxu0 0
      %1696 = vmatprep.subr.bf16.mxu0 0
      %1697 = vmatpush1.bf16.msra.mxu0 0
      %1698 = vmatprep.subr.bf16.mxu0 0
      %1699 = vmatpush1.bf16.msra.mxu0 0
      %1700 = vmatprep.subr.bf16.mxu0 0
      %1701 = vmatpush1.bf16.msra.mxu0 0
      %1702 = vmatprep.subr.bf16.mxu0 0
      %1703 = vmatpush1.bf16.msra.mxu0 0
      %1704 = vmatprep.subr.bf16.mxu0 0
      %1705 = vmatpush1.bf16.msra.mxu0 0
      %1706 = vmatprep.mubr.bf16.mxu0 0
      %1707 = vmatmul.mubr.bf16.gmra.mrb[0].mxu0 %v1182
      %v1708 = vpop.f32.mrb[0].mxu0
      %v1709 = vadd.f32 %v1624, %v1708
      %v1710 = vpop.f32.mrb[0].mxu0
      %v1711 = vpop.f32.mrb[0].mxu0
      %v1712 = vpop.f32.mrb[0].mxu0
      %1713 = vdwg.mxu0
      %v1714 = vld [vmem:[%s16] sm:$0x1]
      %v1715 = vld [vmem:[%s17] sm:$0x1]
      %v1716 = vrot.slane %v1709, 4
      %v1717 = vadd.f32 %v1709, %v1716
      %v1718 = vrot.slane %v1717, 2
      %v1719 = vadd.f32 %v1717, %v1718
      %v1720 = vrot.slane %v1719, 1
      %v1721 = vadd.f32 %v1719, %v1720
      %v1722 = vmul.f32 %v1709, %v1709
      %v1723 = vrot.slane %v1722, 4
      %v1724 = vadd.f32 %v1722, %v1723
      %v1725 = vrot.slane %v1724, 2
      %v1726 = vadd.f32 %v1724, %v1725
      %v1727 = vrot.slane %v1726, 1
      %v1728 = vadd.f32 %v1726, %v1727
      %v1729 = vmul.f32 %v1721, 0.125
      %v1730 = vmul.f32 %v1728, 0.125
      %v1731 = vmul.f32 %v1729, %v1729
      %v1732 = vsub.f32 %v1730, %v1731
      %v1733 = vmax.f32 %v1732, 0.0
      %v1734 = vsub.f32 %v1709, %v1729
      %v1735 = vadd.f32 %v1733, 1e-05
      %v1736 = vrsqrt.pop %v1735
      %v1737 = vmul.f32 %v1734, %v1736
      %v1739 = vlaneseq
      %v1740 = vshrl.u32 %v1739, 7
      %v1741 = vsub.s32 0, %v1740
      %v1742 = vrot.slane %v1714, %v1741
      %v1744 = vmul.f32 %v1737, %v1742
      %v1746 = vlaneseq
      %v1747 = vshrl.u32 %v1746, 7
      %v1748 = vsub.s32 0, %v1747
      %v1749 = vrot.slane %v1715, %v1748
      %v1751 = vadd.f32 %v1744, %v1749
      %v1752 = vmax.f32 %v1751, 0.0
      %v1753 = vpack.c.bf16 %v1752, %v1752
      %v1754 = vld [vmem:[%s18] sm:$0xf]
      %v1755 = vld [vmem:[%s18 + $0x4] sm:$0xf]
      %v1756 = vld [vmem:[%s18 + $0x8] sm:$0xf]
      %v1757 = vld [vmem:[%s18 + $0xc] sm:$0xf]
      %v1758 = vld [vmem:[%s18 + $0x10] sm:$0xf]
      %v1759 = vld [vmem:[%s18 + $0x14] sm:$0xf]
      %v1760 = vld [vmem:[%s18 + $0x18] sm:$0xf]
      %v1761 = vld [vmem:[%s18 + $0x1c] sm:$0xf]
      %v1762 = vld [vmem:[%s18 + $0x20] sm:$0xf]
      %v1763 = vld [vmem:[%s18 + $0x24] sm:$0xf]
      %v1764 = vld [vmem:[%s18 + $0x28] sm:$0xf]
      %v1765 = vld [vmem:[%s18 + $0x2c] sm:$0xf]
      %v1766 = vld [vmem:[%s18 + $0x30] sm:$0xf]
      %v1767 = vld [vmem:[%s18 + $0x34] sm:$0xf]
      %v1768 = vld [vmem:[%s18 + $0x38] sm:$0xf]
      %v1769 = vld [vmem:[%s18 + $0x3c] sm:$0xf]
      %v1770 = vld [vmem:[%s19] sm:$0x1]
      %v1772 = vlaneseq
      %v1773 = vshrl.u32 %v1772, 7
      %v1774 = vsub.s32 0, %v1773
      %v1775 = vrot.slane %v1770, %v1774
      %v1793 = vunpack.c.l.b16 %v1754
      %v1794 = vunpack.c.l.b16 %v1755
      %v1795 = vunpack.c.l.b16 %v1756
      %v1796 = vunpack.c.l.b16 %v1757
      %v1797 = vunpack.c.l.b16 %v1758
      %v1798 = vunpack.c.l.b16 %v1759
      %v1799 = vunpack.c.l.b16 %v1760
      %v1800 = vunpack.c.l.b16 %v1761
      %v1801 = vunpack.c.l.b16 %v1762
      %v1802 = vunpack.c.l.b16 %v1763
      %v1803 = vunpack.c.l.b16 %v1764
      %v1804 = vunpack.c.l.b16 %v1765
      %v1805 = vunpack.c.l.b16 %v1766
      %v1806 = vunpack.c.l.b16 %v1767
      %v1807 = vunpack.c.l.b16 %v1768
      %v1808 = vunpack.c.l.b16 %v1769
      %v1809 = vpack.c.b16 %v1794, %v1793
      %v1810 = vpack.c.b16 %v1796, %v1795
      %v1811 = vpack.c.b16 %v1798, %v1797
      %v1812 = vpack.c.b16 %v1800, %v1799
      %v1813 = vpack.c.b16 %v1802, %v1801
      %v1814 = vpack.c.b16 %v1804, %v1803
      %v1815 = vpack.c.b16 %v1806, %v1805
      %v1816 = vpack.c.b16 %v1808, %v1807
      %1825 = vmatprep.subr.bf16.mxu0 0
      %1826 = vmatpush1.bf16.msra.mxu0 %v1809
      %1827 = vmatprep.subr.bf16.mxu0 0
      %1828 = vmatpush1.bf16.msra.mxu0 %v1810
      %1829 = vmatprep.subr.bf16.mxu0 0
      %1830 = vmatpush1.bf16.msra.mxu0 %v1811
      %1831 = vmatprep.subr.bf16.mxu0 0
      %1832 = vmatpush1.bf16.msra.mxu0 %v1812
      %1833 = vmatprep.subr.bf16.mxu0 0
      %1834 = vmatpush1.bf16.msra.mxu0 %v1813
      %1835 = vmatprep.subr.bf16.mxu0 0
      %1836 = vmatpush1.bf16.msra.mxu0 %v1814
      %1837 = vmatprep.subr.bf16.mxu0 0
      %1838 = vmatpush1.bf16.msra.mxu0 %v1815
      %1839 = vmatprep.subr.bf16.mxu0 0
      %1840 = vmatpush1.bf16.msra.mxu0 %v1816
      %1841 = vmatprep.subr.bf16.mxu0 0
      %1842 = vmatpush1.bf16.msra.mxu0 0
      %1843 = vmatprep.subr.bf16.mxu0 0
      %1844 = vmatpush1.bf16.msra.mxu0 0
      %1845 = vmatprep.subr.bf16.mxu0 0
      %1846 = vmatpush1.bf16.msra.mxu0 0
      %1847 = vmatprep.subr.bf16.mxu0 0
      %1848 = vmatpush1.bf16.msra.mxu0 0
      %1849 = vmatprep.subr.bf16.mxu0 0
      %1850 = vmatpush1.bf16.msra.mxu0 0
      %1851 = vmatprep.subr.bf16.mxu0 0
      %1852 = vmatpush1.bf16.msra.mxu0 0
      %1853 = vmatprep.subr.bf16.mxu0 0
      %1854 = vmatpush1.bf16.msra.mxu0 0
      %1855 = vmatprep.subr.bf16.mxu0 0
      %1856 = vmatpush1.bf16.msra.mxu0 0
      %1857 = vmatprep.mubr.bf16.mxu0 0
      %1858 = vmatmul.mubr.bf16.gmra.mrb[0].mxu0 %v1753
      %v1859 = vpop.f32.mrb[0].mxu0
      %v1860 = vadd.f32 %v1775, %v1859
      %v1861 = vpop.f32.mrb[0].mxu0
      %v1862 = vpop.f32.mrb[0].mxu0
      %v1863 = vpop.f32.mrb[0].mxu0
      %1864 = vdwg.mxu0
      %v1865 = vld [vmem:[%s20] sm:$0x1]
      %v1866 = vld [vmem:[%s21] sm:$0x1]
      %v1867 = vrot.slane %v1860, 4
      %v1868 = vadd.f32 %v1860, %v1867
      %v1869 = vrot.slane %v1868, 2
      %v1870 = vadd.f32 %v1868, %v1869
      %v1871 = vrot.slane %v1870, 1
      %v1872 = vadd.f32 %v1870, %v1871
      %v1873 = vmul.f32 %v1860, %v1860
      %v1874 = vrot.slane %v1873, 4
      %v1875 = vadd.f32 %v1873, %v1874
      %v1876 = vrot.slane %v1875, 2
      %v1877 = vadd.f32 %v1875, %v1876
      %v1878 = vrot.slane %v1877, 1
      %v1879 = vadd.f32 %v1877, %v1878
      %v1880 = vmul.f32 %v1872, 0.125
      %v1881 = vmul.f32 %v1879, 0.125
      %v1882 = vmul.f32 %v1880, %v1880
      %v1883 = vsub.f32 %v1881, %v1882
      %v1884 = vmax.f32 %v1883, 0.0
      %v1885 = vsub.f32 %v1860, %v1880
      %v1886 = vadd.f32 %v1884, 1e-05
      %v1887 = vrsqrt.pop %v1886
      %v1888 = vmul.f32 %v1885, %v1887
      %v1890 = vlaneseq
      %v1891 = vshrl.u32 %v1890, 7
      %v1892 = vsub.s32 0, %v1891
      %v1893 = vrot.slane %v1865, %v1892
      %v1895 = vmul.f32 %v1888, %v1893
      %v1897 = vlaneseq
      %v1898 = vshrl.u32 %v1897, 7
      %v1899 = vsub.s32 0, %v1898
      %v1900 = vrot.slane %v1866, %v1899
      %v1902 = vadd.f32 %v1895, %v1900
      %v1903 = vmax.f32 %v1902, 0.0
      %v1904 = vpack.c.bf16 %v1903, %v1903
      %v1905 = vld [vmem:[%s22] sm:$0xf]
      %v1906 = vld [vmem:[%s22 + $0x4] sm:$0xf]
      %v1907 = vld [vmem:[%s22 + $0x8] sm:$0xf]
      %v1908 = vld [vmem:[%s22 + $0xc] sm:$0xf]
      %v1909 = vld [vmem:[%s22 + $0x10] sm:$0xf]
      %v1910 = vld [vmem:[%s22 + $0x14] sm:$0xf]
      %v1911 = vld [vmem:[%s22 + $0x18] sm:$0xf]
      %v1912 = vld [vmem:[%s22 + $0x1c] sm:$0xf]
      %v1913 = vld [vmem:[%s22 + $0x20] sm:$0xf]
      %v1914 = vld [vmem:[%s22 + $0x24] sm:$0xf]
      %v1915 = vld [vmem:[%s22 + $0x28] sm:$0xf]
      %v1916 = vld [vmem:[%s22 + $0x2c] sm:$0xf]
      %v1917 = vld [vmem:[%s22 + $0x30] sm:$0xf]
      %v1918 = vld [vmem:[%s22 + $0x34] sm:$0xf]
      %v1919 = vld [vmem:[%s22 + $0x38] sm:$0xf]
      %v1920 = vld [vmem:[%s22 + $0x3c] sm:$0xf]
      %v1921 = vld [vmem:[%s23] sm:$0x1]
      %v1923 = vlaneseq
      %v1924 = vshrl.u32 %v1923, 7
      %v1925 = vsub.s32 0, %v1924
      %v1926 = vrot.slane %v1921, %v1925
      %v1944 = vunpack.c.l.b16 %v1905
      %v1945 = vunpack.c.l.b16 %v1906
      %v1946 = vunpack.c.l.b16 %v1907
      %v1947 = vunpack.c.l.b16 %v1908
      %v1948 = vunpack.c.l.b16 %v1909
      %v1949 = vunpack.c.l.b16 %v1910
      %v1950 = vunpack.c.l.b16 %v1911
      %v1951 = vunpack.c.l.b16 %v1912
      %v1952 = vunpack.c.l.b16 %v1913
      %v1953 = vunpack.c.l.b16 %v1914
      %v1954 = vunpack.c.l.b16 %v1915
      %v1955 = vunpack.c.l.b16 %v1916
      %v1956 = vunpack.c.l.b16 %v1917
      %v1957 = vunpack.c.l.b16 %v1918
      %v1958 = vunpack.c.l.b16 %v1919
      %v1959 = vunpack.c.l.b16 %v1920
      %v1960 = vpack.c.b16 %v1945, %v1944
      %v1961 = vpack.c.b16 %v1947, %v1946
      %v1962 = vpack.c.b16 %v1949, %v1948
      %v1963 = vpack.c.b16 %v1951, %v1950
      %v1964 = vpack.c.b16 %v1953, %v1952
      %v1965 = vpack.c.b16 %v1955, %v1954
      %v1966 = vpack.c.b16 %v1957, %v1956
      %v1967 = vpack.c.b16 %v1959, %v1958
      %1976 = vmatprep.subr.bf16.mxu0 0
      %1977 = vmatpush1.bf16.msra.mxu0 %v1960
      %1978 = vmatprep.subr.bf16.mxu0 0
      %1979 = vmatpush1.bf16.msra.mxu0 %v1961
      %1980 = vmatprep.subr.bf16.mxu0 0
      %1981 = vmatpush1.bf16.msra.mxu0 %v1962
      %1982 = vmatprep.subr.bf16.mxu0 0
      %1983 = vmatpush1.bf16.msra.mxu0 %v1963
      %1984 = vmatprep.subr.bf16.mxu0 0
      %1985 = vmatpush1.bf16.msra.mxu0 %v1964
      %1986 = vmatprep.subr.bf16.mxu0 0
      %1987 = vmatpush1.bf16.msra.mxu0 %v1965
      %1988 = vmatprep.subr.bf16.mxu0 0
      %1989 = vmatpush1.bf16.msra.mxu0 %v1966
      %1990 = vmatprep.subr.bf16.mxu0 0
      %1991 = vmatpush1.bf16.msra.mxu0 %v1967
      %1992 = vmatprep.subr.bf16.mxu0 0
      %1993 = vmatpush1.bf16.msra.mxu0 0
      %1994 = vmatprep.subr.bf16.mxu0 0
      %1995 = vmatpush1.bf16.msra.mxu0 0
      %1996 = vmatprep.subr.bf16.mxu0 0
      %1997 = vmatpush1.bf16.msra.mxu0 0
      %1998 = vmatprep.subr.bf16.mxu0 0
      %1999 = vmatpush1.bf16.msra.mxu0 0
      %2000 = vmatprep.subr.bf16.mxu0 0
      %2001 = vmatpush1.bf16.msra.mxu0 0
      %2002 = vmatprep.subr.bf16.mxu0 0
      %2003 = vmatpush1.bf16.msra.mxu0 0
      %2004 = vmatprep.subr.bf16.mxu0 0
      %2005 = vmatpush1.bf16.msra.mxu0 0
      %2006 = vmatprep.subr.bf16.mxu0 0
      %2007 = vmatpush1.bf16.msra.mxu0 0
      %2008 = vmatprep.mubr.bf16.mxu0 0
      %2009 = vmatmul.mubr.bf16.gmra.mrb[0].mxu0 %v1904
      %v2010 = vpop.f32.mrb[0].mxu0
      %v2011 = vadd.f32 %v1926, %v2010
      %v2012 = vpop.f32.mrb[0].mxu0
      %v2013 = vpop.f32.mrb[0].mxu0
      %v2014 = vpop.f32.mrb[0].mxu0
      %2015 = vdwg.mxu0
      %v2016 = vlaneseq
      %v2017 = vand.u32 %v2016, 127
      %vm2018 = vcmp.lt.s32.totalorder %v2017, 10
      %v2019 = vsel %vm2018, %v2011, -1e+30
      %2020 = vmax.xlane.f32.xlu0 %v2019
      %v2021 = vpop.xlane.xlu0 %2020
      %v2022 = vsub.f32 %v2019, %v2021
      %v2023 = vmul.f32 %v2022, 1.442695
      %v2024 = vpow.pop %v2023
      %2025 = vadd.xlane.f32.xlu0 %v2024
      %v2026 = vpop.xlane.xlu0 %2025
      %v2027 = vrcp.pop %v2026
      %v2028 = vmul.f32 %v2024, %v2027
      %2029 = vst [vmem:[%s773] sm:$0xff] %v2028
      %p2030 = scmp.lt.s32.totalorder %s37, 1
      %s2031 = scalar_select %p2030, %s37, 1
      %s2032 = smul.addr %s2031, 8
      %s2033 = scalar_lea.vmem %s24, %s2032
      %p2034 = scmp.lt.s32.totalorder %s37, 1
      %s2035 = scalar_select %p2034, %s37, 1
      %s2036 = smul.addr %s2035, 8
      %s2037 = scalar_lea.vmem %s25, %s2036
      // Predicated region
      $region117: #{network_vtcc_forward.1} parent=115 // pred_check
        %p2038 = pneg %p564
      $region118: #{network_vtcc_forward.1} parent=115 // pred_check_branch
        %2040 = sbr.rel (%p2038) target = $region120
      $region119: #{network_vtcc_forward.1} parent=115 // pred_region
        _
      $region120: #{network_vtcc_forward.1} parent=115 // pred_fallthru
        _
      // Predicated region
      $region121: #{network_vtcc_forward.1} parent=115 // pred_check
        %p2041 = pneg %p590
      $region122: #{network_vtcc_forward.1} parent=115 // pred_check_branch
        %2043 = sbr.rel (%p2041) target = $region124
      $region123: #{network_vtcc_forward.1} parent=115 // pred_region
        _
      $region124: #{network_vtcc_forward.1} parent=115 // pred_fallthru
        _
    $region116: #{network_vtcc_forward.1} parent=5 // pred_fallthru
      _
    %p2044 = scmp.le.s32.totalorder 2, %s32
    // Predicated region
    $region125: #{network_vtcc_forward.1} parent=5 // pred_check
      %p2045 = pneg %p2044
    $region126: #{network_vtcc_forward.1} parent=5 // pred_check_branch
      %2047 = sbr.rel (%p2045) target = $region128
    $region127: #{network_vtcc_forward.1} parent=5 // pred_region
      %s2048 = ssub.s32 %s32, 2
      // Predicated region
      $region129: #{network_vtcc_forward.1} parent=127 // pred_check
        %p2049 = pneg %p570
      $region130: #{network_vtcc_forward.1} parent=127 // pred_check_branch
        %2051 = sbr.rel (%p2049) target = $region132
      $region131: #{network_vtcc_forward.1} parent=127 // pred_region
        %p2052 = scmp.lt.s32.totalorder %s38, 1
        %s2053 = scalar_select %p2052, %s38, 1
        %s2054 = smul.addr %s2053, 8
        %s2055 = scalar_lea.vmem %s24, %s2054
      $region132: #{network_vtcc_forward.1} parent=127 // pred_fallthru
        _
      // Predicated region
      $region133: #{network_vtcc_forward.1} parent=127 // pred_check
        %p2056 = pneg %p596
      $region134: #{network_vtcc_forward.1} parent=127 // pred_check_branch
        %2058 = sbr.rel (%p2056) target = $region136
      $region135: #{network_vtcc_forward.1} parent=127 // pred_region
        %p2059 = scmp.lt.s32.totalorder %s38, 1
        %s2060 = scalar_select %p2059, %s38, 1
        %s2061 = smul.addr %s2060, 8
        %s2062 = scalar_lea.vmem %s25, %s2061
      $region136: #{network_vtcc_forward.1} parent=127 // pred_fallthru
        _
    $region128: #{network_vtcc_forward.1} parent=5 // pred_fallthru
      _
  $region6: #{network_vtcc_forward.1} parent=0 // loop_footer
    %s36 = sadd.s32 1, %s32
  $region7: #{network_vtcc_forward.1} parent=0 // loop_footer_branch
    %31 = sbr.rel target = $region3
  $region8: #{network_vtcc_forward.1} parent=0 // loop_exit
    _

</llo_original>
